<compile_context>
chip_gen: v7x
topology: tpu7x:2x2x1
jax: 0.10.0
libtpu: 0.0.40
codegen_flags: <defaults>
</compile_context>

<pallas_src>
import functools
import math

import jax
import jax.numpy as jnp
from jax import lax
from jax.experimental import pallas as pl
from jax.experimental.pallas import tpu as pltpu

LANE = 128                 # lane width; all slabs / activations padded to 128
KPAD = 128                 # every weight block is a zero-padded (128,128) tile
MM_DTYPE = jnp.bfloat16    # matmul operand dtype; accumulation is always f32

# Static block / row indices into the packed parameter slabs.
(W_Q, W_K, W_V, W_O, W_FF1, W_FF2, W_L1, W_L2, W_L3, W_D) = range(10)
(B_Q, B_K, B_V, B_O, V_LN1W, V_LN1B, B_FF1, B_FF2, V_LN2W, V_LN2B,
 B_L1, B_L2, B_L3, B_D) = range(14)
N_WBLOCKS = 10
N_VROWS = 14


def _round_up(x, m):
    return (x + m - 1) // m * m


def _erf(x):
    # Abramowitz & Stegun 7.1.26 (max abs err ~1.5e-7).  Uses only VPU ops and
    # one EUP exp, so it does not rely on an erf lowering in Mosaic.
    a1, a2, a3, a4, a5 = (0.254829592, -0.284496736, 1.421413741,
                          -1.453152027, 1.061405429)
    pp = 0.3275911
    sgn = jnp.where(x >= 0.0, 1.0, -1.0)
    ax = jnp.abs(x)
    t = 1.0 / (1.0 + pp * ax)
    poly = ((((a5 * t + a4) * t + a3) * t + a2) * t + a1) * t
    return sgn * (1.0 - poly * jnp.exp(-ax * ax))


def _gelu_exact(x):
    # PyTorch F.gelu default: exact erf formulation (f32 elementwise).
    return 0.5 * x * (1.0 + _erf(x * 0.7071067811865476))


# ----------------------------------------------------------------------------
# Fused forward kernel
# ----------------------------------------------------------------------------
def tfmlp_kernel(x_ref, w_ref, b_ref, o_ref, *, batch, heads, e):
    f32 = jnp.float32
    N = x_ref.shape[0]
    Dh = e // heads

    def wblk(i):                      # (128,128) bf16 weight block, static slice
        return w_ref[i * KPAD:(i + 1) * KPAD, :]

    def vrow(i):                      # (1,128) f32 bias / LN-vector row
        return b_ref[i:i + 1, :]

    def mm(a, wi, bi):                # (N,128) f32 @ padded block -> (N,128) f32
        y = jnp.dot(a.astype(MM_DTYPE), wblk(wi), preferred_element_type=f32)
        return y + vrow(bi)

    feat_mask = lax.broadcasted_iota(jnp.int32, (1, LANE), 1) < e
    inv_e = 1.0 / e

    def layernorm(a, wi, bi, eps=1e-5):
        # Statistics over the `e` real feature lanes only (padded lanes are 0);
        # masked two-pass variance; padded lanes forced back to zero.
        mu = jnp.sum(a, axis=-1, keepdims=True) * inv_e
        d = jnp.where(feat_mask, a - mu, 0.0)
        var = jnp.sum(d * d, axis=-1, keepdims=True) * inv_e
        return d * lax.rsqrt(var + eps) * vrow(wi) + vrow(bi)

    x = x_ref[...]                                   # (N,128) f32, lanes 0:e real

    # ----------------- self-attention (scale folded into Wq/bq) --------------
    q = mm(x, W_Q, B_Q)
    k = mm(x, W_K, B_K)
    v = mm(x, W_V, B_V)
    qb, kb, vb = (t.astype(MM_DTYPE) for t in (q, k, v))   # cast once, not per head

    # Flattened (seq*batch, e) rows attend only within their own batch element:
    # row r = s*batch + b belongs to batch r % batch  (block-diagonal mask).
    row_b = lax.broadcasted_iota(jnp.int32, (N, N), 0) % batch
    col_b = lax.broadcasted_iota(jnp.int32, (N, N), 1) % batch
    attn_bias = jnp.where(row_b == col_b, 0.0, -1e30).astype(f32)

    head_outs = []
    for hh in range(heads):                                 # static, tiny
        sl = slice(hh * Dh, (hh + 1) * Dh)
        s = lax.dot_general(qb[:, sl], kb[:, sl], (((1,), (1,)), ((), ())),
                            preferred_element_type=f32) + attn_bias   # (N,N)
        m = jnp.max(s, axis=-1, keepdims=True)
        p = jnp.exp(s - m)
        r = pl.reciprocal(jnp.sum(p, axis=-1, keepdims=True), approx=True)
        head_outs.append(jnp.dot((p * r).astype(MM_DTYPE), vb[:, sl],
                                 preferred_element_type=f32))         # (N,Dh)
    head_outs.append(jnp.zeros((N, LANE - e), f32))         # lane-pad the concat
    hc = jnp.concatenate(head_outs, axis=-1)                # (N,128)

    sa = mm(hc, W_O, B_O)                                   # ONE out-proj matmul
    y = layernorm(x + sa, V_LN1W, V_LN1B)                   # post-norm residual 1

    # --------------------------- feed-forward block --------------------------
    ff = mm(_gelu_exact(mm(y, W_FF1, B_FF1)), W_FF2, B_FF2)
    y = layernorm(y + ff, V_LN2W, V_LN2B)                   # post-norm residual 2

    # -------------------------------- MLP head -------------------------------
    h1 = jnp.maximum(mm(y, W_L1, B_L1), 0.0)                # linear1 + relu
    h2 = jnp.maximum(mm(h1, W_L2, B_L2), 0.0)               # linear2 + relu
    h3 = mm(h2, W_L3, B_L3)              # lanes 0:dim        = h (linear3)
    logit = mm(h3, W_D, B_D)             # lanes dim:dim+nc   = dense(h)
    o_ref[...] = h3 + logit              # one lane-dense (N,128) store


# ----------------------------------------------------------------------------
# Wrapper
# ----------------------------------------------------------------------------
def tfmlp_forward(x, w_slab, b_slab, *, heads, dim, num_classes):
    S, B, E = x.shape
    N = S * B
    assert E % heads == 0 and E <= LANE and dim + num_classes <= LANE

    # Lane-dense input slab: layout plumbing only (real features in lanes 0:E).
    x_pad = jnp.zeros((N, LANE), jnp.float32).at[:, :E].set(x.reshape(N, E))

    kern = functools.partial(tfmlp_kernel, batch=B, heads=heads, e=E)
    merged = pl.pallas_call(
        kern,
        out_shape=jax.ShapeDtypeStruct((N, LANE), jnp.float32),
        grid=(1,),
        in_specs=[pl.BlockSpec(x_pad.shape, lambda i: (0, 0)),
                  pl.BlockSpec(w_slab.shape, lambda i: (0, 0)),
                  pl.BlockSpec(b_slab.shape, lambda i: (0, 0))],
        out_specs=pl.BlockSpec((N, LANE), lambda i: (0, 0)),
        compiler_params=pltpu.CompilerParams(
            dimension_semantics=("arbitrary",)),
    )(x_pad, w_slab, b_slab)

    h = merged[:, :dim].reshape(S, B, dim)
    out = merged[:, dim:dim + num_classes].reshape(S, B, num_classes)
    return h, out


# ----------------------------------------------------------------------------
# Parameter init (PyTorch layout) + one-time packing into the two slabs
# ----------------------------------------------------------------------------
def init_params(key, dim_t, dim, num_classes):
    def lin(k, out_d, in_d, scale=0.05):
        k1, k2 = jax.random.split(k)
        w = jax.random.normal(k1, (out_d, in_d), jnp.float32) * scale
        b = jax.random.normal(k2, (out_d,), jnp.float32) * scale
        return w, b

    keys = jax.random.split(key, 8)
    p = {}
    p["in_proj_w"], p["in_proj_b"] = lin(keys[0], 3 * dim_t, dim_t)
    p["out_proj_w"], p["out_proj_b"] = lin(keys[1], dim_t, dim_t)
    p["ln1_w"] = jnp.ones((dim_t,), jnp.float32)
    p["ln1_b"] = jnp.zeros((dim_t,), jnp.float32)
    p["ff1_w"], p["ff1_b"] = lin(keys[2], dim, dim_t)        # dim_feedforward=dim
    p["ff2_w"], p["ff2_b"] = lin(keys[3], dim_t, dim)
    p["ln2_w"] = jnp.ones((dim_t,), jnp.float32)
    p["ln2_b"] = jnp.zeros((dim_t,), jnp.float32)
    p["l1_w"], p["l1_b"] = lin(keys[4], dim, dim_t)          # linear1
    p["l2_w"], p["l2_b"] = lin(keys[5], 2 * dim, dim)        # linear2
    p["l3_w"], p["l3_b"] = lin(keys[6], dim, 2 * dim)        # linear3
    p["dense_w"], p["dense_b"] = lin(keys[7], num_classes, dim)   # dense
    return p


def pack_params(p, *, dim_t, dim, num_classes, heads):
    """One-time preprocessing (not on the hot path):
    - transpose PyTorch (out,in) -> (in,out), zero-pad each weight to a
      (128,128) block, stack into one bf16 weight slab,
    - fold the 1/sqrt(head_dim) attention scale into Wq/bq,
    - place the dense weight/bias at lane offset `dim` so the dense logits land
      next to h in the single merged output block,
    - stack biases / LN vectors into one f32 (16,128) row slab."""
    E = dim_t
    assert E % heads == 0 and max(E, dim, 2 * dim, dim + num_classes) <= LANE
    scale = 1.0 / math.sqrt(E // heads)

    def wblock(w_pt, col_off=0):
        wt = jnp.asarray(w_pt, jnp.float32).T                  # (in, out)
        blk = jnp.zeros((KPAD, LANE), jnp.float32)
        return blk.at[:wt.shape[0], col_off:col_off + wt.shape[1]].set(wt)

    def vrow(vec, col_off=0):
        v = jnp.asarray(vec, jnp.float32).reshape(-1)
        return jnp.zeros((LANE,), jnp.float32).at[col_off:col_off + v.shape[0]].set(v)

    w_blocks = [
        wblock(p["in_proj_w"][:E] * scale),          # W_Q  (scale folded)
        wblock(p["in_proj_w"][E:2 * E]),             # W_K
        wblock(p["in_proj_w"][2 * E:]),              # W_V
        wblock(p["out_proj_w"]),                     # W_O
        wblock(p["ff1_w"]),                          # W_FF1
        wblock(p["ff2_w"]),                          # W_FF2
        wblock(p["l1_w"]),                           # W_L1
        wblock(p["l2_w"]),                           # W_L2
        wblock(p["l3_w"]),                           # W_L3
        wblock(p["dense_w"], col_off=dim),           # W_D (output at lanes dim:)
    ]
    assert len(w_blocks) == N_WBLOCKS
    w_slab = jnp.concatenate(w_blocks, axis=0).astype(MM_DTYPE)   # (1280,128) bf16

    rows = [
        vrow(p["in_proj_b"][:E] * scale),            # B_Q (scale folded)
        vrow(p["in_proj_b"][E:2 * E]),               # B_K
        vrow(p["in_proj_b"][2 * E:]),                # B_V
        vrow(p["out_proj_b"]),                       # B_O
        vrow(p["ln1_w"]), vrow(p["ln1_b"]),          # V_LN1W, V_LN1B
        vrow(p["ff1_b"]), vrow(p["ff2_b"]),          # B_FF1, B_FF2
        vrow(p["ln2_w"]), vrow(p["ln2_b"]),          # V_LN2W, V_LN2B
        vrow(p["l1_b"]), vrow(p["l2_b"]), vrow(p["l3_b"]),   # B_L1..B_L3
        vrow(p["dense_b"], col_off=dim),             # B_D (at lanes dim:)
    ]
    assert len(rows) == N_VROWS
    nrows = _round_up(N_VROWS, 8)
    b_slab = jnp.zeros((nrows, LANE), jnp.float32).at[:N_VROWS].set(jnp.stack(rows))
    return w_slab, b_slab


# ----------------------------------------------------------------------------
# Pure-JAX f32 reference (for a tolerance check; bf16 kernel ~1e-2 level diffs)
# ----------------------------------------------------------------------------
def ref_forward(x, p, *, heads):
    S, B, E = x.shape
    Dh = E // heads

    def lin(z, w, b):                               # PyTorch (out,in) layout
        return jnp.einsum('...i,oi->...o', z, w) + b

    def ln(z, w, b, eps=1e-5):
        mu = z.mean(-1, keepdims=True)
        var = ((z - mu) ** 2).mean(-1, keepdims=True)
        return (z - mu) / jnp.sqrt(var + eps) * w + b

    q = lin(x, p["in_proj_w"][:E], p["in_proj_b"][:E])
    k = lin(x, p["in_proj_w"][E:2 * E], p["in_proj_b"][E:2 * E])
    v = lin(x, p["in_proj_w"][2 * E:], p["in_proj_b"][2 * E:])

    def split(z):                                    # (S,B,E) -> (B,H,S,Dh)
        return z.reshape(S, B, heads, Dh).transpose(1, 2, 0, 3)

    qh, kh, vh = split(q), split(k), split(v)
    s = jnp.einsum('bhqd,bhkd->bhqk', qh, kh) / jnp.sqrt(jnp.float32(Dh))
    a = jax.nn.softmax(s, axis=-1)
    o = jnp.einsum('bhqk,bhkd->bhqd', a, vh).transpose(2, 0, 1, 3).reshape(S, B, E)
    sa = lin(o, p["out_proj_w"], p["out_proj_b"])

    y = ln(x + sa, p["ln1_w"], p["ln1_b"])
    ff = lin(jax.nn.gelu(lin(y, p["ff1_w"], p["ff1_b"]), approximate=False),
             p["ff2_w"], p["ff2_b"])
    y = ln(y + ff, p["ln2_w"], p["ln2_b"])

    h = jax.nn.relu(lin(y, p["l1_w"], p["l1_b"]))
    h = jax.nn.relu(lin(h, p["l2_w"], p["l2_b"]))
    h = lin(h, p["l3_w"], p["l3_b"])
    return h, lin(h, p["dense_w"], p["dense_b"])


if __name__ == "__main__":
    S, B = 8, 2
    dim_t, dim, heads, num_classes = 32, 32, 4, 1

    key = jax.random.PRNGKey(0)
    k_params, k_x = jax.random.split(key)
    params = init_params(k_params, dim_t, dim, num_classes)
    w_slab, b_slab = pack_params(params, dim_t=dim_t, dim=dim,
                                 num_classes=num_classes, heads=heads)
    x = jax.random.normal(k_x, (S, B, dim_t), jnp.float32)

    fwd = jax.jit(functools.partial(tfmlp_forward, heads=heads, dim=dim,
                                    num_classes=num_classes))
    h, out = fwd(x, w_slab, b_slab)
    jax.block_until_ready((h, out))

    assert h.shape == (S, B, dim) and out.shape == (S, B, num_classes)
    assert bool(jnp.all(jnp.isfinite(h))) and bool(jnp.all(jnp.isfinite(out)))

    h_want, out_want = ref_forward(x, params, heads=heads)
    assert float(jnp.max(jnp.abs(h - h_want))) < 5e-2
    assert float(jnp.max(jnp.abs(out - out_want))) < 5e-2
    print("KERNEL_OK")
</pallas_src>

<mosaic_0001>
module attributes {stable_mosaic.version = 11 : i64} {
  func.func @tfmlp_kernel(%arg0: i32, %arg1: memref<16x128xf32, #tpu.memory_space<vmem>>, %arg2: memref<1280x128xbf16, #tpu.memory_space<vmem>>, %arg3: memref<16x128xf32, #tpu.memory_space<vmem>>, %arg4: memref<16x128xf32, #tpu.memory_space<vmem>>) attributes {dimension_semantics = [#tpu.dimension_semantics<arbitrary>], iteration_bounds = array<i64: 1>, scalar_prefetch = 0 : i64, scratch_operands = 0 : i64, tpu.core_type = #tpu.core_type<tc>, window_params = [{pipeline_mode = #tpu.pipeline_mode<synchronous>, transform_indices = @transform_0, window_bounds = array<i64: 16, 128>}, {pipeline_mode = #tpu.pipeline_mode<synchronous>, transform_indices = @transform_1, window_bounds = array<i64: 1280, 128>}, {pipeline_mode = #tpu.pipeline_mode<synchronous>, transform_indices = @transform_2, window_bounds = array<i64: 16, 128>}, {pipeline_mode = #tpu.pipeline_mode<synchronous>, transform_indices = @transform_3, window_bounds = array<i64: 16, 128>}]} {
    %0 = tpu.iota {dimensions = array<i32: 1>} : vector<1x128xi32>
    %c32_i32 = arith.constant 32 : i32
    %1 = vector.broadcast %c32_i32 : i32 to vector<1x128xi32>
    %2 = arith.cmpi slt, %0, %1 : vector<1x128xi32>
    %c0 = arith.constant 0 : index
    %c0_0 = arith.constant 0 : index
    %3 = vector.load %arg1[%c0, %c0_0] : memref<16x128xf32, #tpu.memory_space<vmem>>, vector<16x128xf32>
    %4 = arith.truncf %3 : vector<16x128xf32> to vector<16x128xbf16>
    %c0_1 = arith.constant 0 : index
    %c0_2 = arith.constant 0 : index
    %5 = vector.load %arg2[%c0_1, %c0_2] : memref<1280x128xbf16, #tpu.memory_space<vmem>>, vector<128x128xbf16>
    %cst = arith.constant dense<0.000000e+00> : vector<16x128xf32>
    %6 = tpu.matmul %4, %5, %cst {dimension_numbers = #tpu.dot_dimension_numbers<[1], [0], [0], [1], [0, 0, 1, 1], [], []>} : vector<16x128xbf16>, vector<128x128xbf16>, vector<16x128xf32> -> vector<16x128xf32>
    %c0_3 = arith.constant 0 : index
    %c0_4 = arith.constant 0 : index
    %7 = vector.load %arg3[%c0_3, %c0_4] : memref<16x128xf32, #tpu.memory_space<vmem>>, vector<1x128xf32>
    %8 = vector.broadcast %7 : vector<1x128xf32> to vector<16x128xf32>
    %9 = arith.addf %6, %8 : vector<16x128xf32>
    %10 = arith.truncf %3 : vector<16x128xf32> to vector<16x128xbf16>
    %c128 = arith.constant 128 : index
    %c0_5 = arith.constant 0 : index
    %11 = vector.load %arg2[%c128, %c0_5] : memref<1280x128xbf16, #tpu.memory_space<vmem>>, vector<128x128xbf16>
    %cst_6 = arith.constant dense<0.000000e+00> : vector<16x128xf32>
    %12 = tpu.matmul %10, %11, %cst_6 {dimension_numbers = #tpu.dot_dimension_numbers<[1], [0], [0], [1], [0, 0, 1, 1], [], []>} : vector<16x128xbf16>, vector<128x128xbf16>, vector<16x128xf32> -> vector<16x128xf32>
    %c1 = arith.constant 1 : index
    %c0_7 = arith.constant 0 : index
    %13 = vector.load %arg3[%c1, %c0_7] : memref<16x128xf32, #tpu.memory_space<vmem>>, vector<1x128xf32>
    %14 = vector.broadcast %13 : vector<1x128xf32> to vector<16x128xf32>
    %15 = arith.addf %12, %14 : vector<16x128xf32>
    %16 = arith.truncf %3 : vector<16x128xf32> to vector<16x128xbf16>
    %c256 = arith.constant 256 : index
    %c0_8 = arith.constant 0 : index
    %17 = vector.load %arg2[%c256, %c0_8] : memref<1280x128xbf16, #tpu.memory_space<vmem>>, vector<128x128xbf16>
    %cst_9 = arith.constant dense<0.000000e+00> : vector<16x128xf32>
    %18 = tpu.matmul %16, %17, %cst_9 {dimension_numbers = #tpu.dot_dimension_numbers<[1], [0], [0], [1], [0, 0, 1, 1], [], []>} : vector<16x128xbf16>, vector<128x128xbf16>, vector<16x128xf32> -> vector<16x128xf32>
    %c2 = arith.constant 2 : index
    %c0_10 = arith.constant 0 : index
    %19 = vector.load %arg3[%c2, %c0_10] : memref<16x128xf32, #tpu.memory_space<vmem>>, vector<1x128xf32>
    %20 = vector.broadcast %19 : vector<1x128xf32> to vector<16x128xf32>
    %21 = arith.addf %18, %20 : vector<16x128xf32>
    %22 = arith.truncf %9 : vector<16x128xf32> to vector<16x128xbf16>
    %23 = arith.truncf %15 : vector<16x128xf32> to vector<16x128xbf16>
    %24 = arith.truncf %21 : vector<16x128xf32> to vector<16x128xbf16>
    %25 = tpu.iota {dimensions = array<i32: 0>} : vector<16x16xi32>
    %c2_i32 = arith.constant 2 : i32
    %c0_i32 = arith.constant 0 : i32
    %26 = arith.cmpi eq, %c2_i32, %c0_i32 : i32
    %c1_i32 = arith.constant 1 : i32
    %27 = arith.select %26, %c1_i32, %c2_i32 : i32
    %28 = vector.broadcast %27 : i32 to vector<16x16xi32>
    %29 = arith.remsi %25, %28 : vector<16x16xi32>
    %c0_i32_11 = arith.constant 0 : i32
    %30 = vector.broadcast %c0_i32_11 : i32 to vector<16x16xi32>
    %31 = arith.cmpi ne, %29, %30 : vector<16x16xi32>
    %c0_i32_12 = arith.constant 0 : i32
    %32 = vector.broadcast %c0_i32_12 : i32 to vector<16x16xi32>
    %33 = arith.cmpi slt, %29, %32 : vector<16x16xi32>
    %c0_i32_13 = arith.constant 0 : i32
    %34 = arith.cmpi slt, %27, %c0_i32_13 : i32
    %35 = vector.broadcast %34 : i1 to vector<16x16xi1>
    %36 = vector.broadcast %35 : vector<16x16xi1> to vector<16x16xi1>
    %37 = arith.xori %33, %36 : vector<16x16xi1>
    %38 = arith.andi %37, %31 : vector<16x16xi1>
    %39 = vector.broadcast %27 : i32 to vector<16x16xi32>
    %40 = arith.addi %29, %39 : vector<16x16xi32>
    %41 = arith.select %38, %40, %29 : vector<16x16xi1>, vector<16x16xi32>
    %42 = tpu.iota {dimensions = array<i32: 1>} : vector<16x16xi32>
    %c2_i32_14 = arith.constant 2 : i32
    %c0_i32_15 = arith.constant 0 : i32
    %43 = arith.cmpi eq, %c2_i32_14, %c0_i32_15 : i32
    %c1_i32_16 = arith.constant 1 : i32
    %44 = arith.select %43, %c1_i32_16, %c2_i32_14 : i32
    %45 = vector.broadcast %44 : i32 to vector<16x16xi32>
    %46 = arith.remsi %42, %45 : vector<16x16xi32>
    %c0_i32_17 = arith.constant 0 : i32
    %47 = vector.broadcast %c0_i32_17 : i32 to vector<16x16xi32>
    %48 = arith.cmpi ne, %46, %47 : vector<16x16xi32>
    %c0_i32_18 = arith.constant 0 : i32
    %49 = vector.broadcast %c0_i32_18 : i32 to vector<16x16xi32>
    %50 = arith.cmpi slt, %46, %49 : vector<16x16xi32>
    %c0_i32_19 = arith.constant 0 : i32
    %51 = arith.cmpi slt, %44, %c0_i32_19 : i32
    %52 = vector.broadcast %51 : i1 to vector<16x16xi1>
    %53 = vector.broadcast %52 : vector<16x16xi1> to vector<16x16xi1>
    %54 = arith.xori %50, %53 : vector<16x16xi1>
    %55 = arith.andi %54, %48 : vector<16x16xi1>
    %56 = vector.broadcast %44 : i32 to vector<16x16xi32>
    %57 = arith.addi %46, %56 : vector<16x16xi32>
    %58 = arith.select %55, %57, %46 : vector<16x16xi1>, vector<16x16xi32>
    %59 = arith.cmpi eq, %41, %58 : vector<16x16xi32>
    %cst_20 = arith.constant 0.000000e+00 : f32
    %cst_21 = arith.constant -1.000000e+30 : f32
    %60 = vector.broadcast %cst_20 : f32 to vector<16x16xf32>
    %61 = vector.broadcast %cst_21 : f32 to vector<16x16xf32>
    %62 = arith.select %59, %60, %61 : vector<16x16xi1>, vector<16x16xf32>
    %63 = vector.extract_strided_slice %22 {offsets = [0, 0], sizes = [16, 8], strides = [1, 1]} : vector<16x128xbf16> to vector<16x8xbf16>
    %64 = vector.extract_strided_slice %23 {offsets = [0, 0], sizes = [16, 8], strides = [1, 1]} : vector<16x128xbf16> to vector<16x8xbf16>
    %cst_22 = arith.constant dense<0.000000e+00> : vector<16x16xf32>
    %65 = tpu.matmul %63, %64, %cst_22 {dimension_numbers = #tpu.dot_dimension_numbers<[1], [1], [0], [0], [0, 0, 1, 0], [], []>} : vector<16x8xbf16>, vector<16x8xbf16>, vector<16x16xf32> -> vector<16x16xf32>
    %66 = arith.addf %65, %62 : vector<16x16xf32>
    %cst_23 = arith.constant dense<0xFF800000> : vector<16xf32>
    %67 = vector.multi_reduction <maximumf>, %66, %cst_23 [1] : vector<16x16xf32> to vector<16xf32>
    %68 = vector.shape_cast %67 : vector<16xf32> to vector<16x1xf32>
    %69 = vector.broadcast %68 : vector<16x1xf32> to vector<16x16xf32>
    %70 = arith.subf %66, %69 : vector<16x16xf32>
    %71 = math.exp %70 : vector<16x16xf32>
    %cst_24 = arith.constant dense<0.000000e+00> : vector<16xf32>
    %72 = vector.multi_reduction <add>, %71, %cst_24 [1] : vector<16x16xf32> to vector<16xf32>
    %73 = vector.shape_cast %72 : vector<16xf32> to vector<16x1xf32>
    %74 = tpu.reciprocal %73 {approx = true} : vector<16x1xf32> -> vector<16x1xf32>
    %75 = vector.broadcast %74 : vector<16x1xf32> to vector<16x16xf32>
    %76 = arith.mulf %71, %75 : vector<16x16xf32>
    %77 = arith.truncf %76 : vector<16x16xf32> to vector<16x16xbf16>
    %78 = vector.extract_strided_slice %24 {offsets = [0, 0], sizes = [16, 8], strides = [1, 1]} : vector<16x128xbf16> to vector<16x8xbf16>
    %cst_25 = arith.constant dense<0.000000e+00> : vector<16x8xf32>
    %79 = tpu.matmul %77, %78, %cst_25 {dimension_numbers = #tpu.dot_dimension_numbers<[1], [0], [0], [1], [0, 0, 1, 1], [], []>} : vector<16x16xbf16>, vector<16x8xbf16>, vector<16x8xf32> -> vector<16x8xf32>
    %80 = vector.extract_strided_slice %22 {offsets = [0, 8], sizes = [16, 8], strides = [1, 1]} : vector<16x128xbf16> to vector<16x8xbf16>
    %81 = vector.extract_strided_slice %23 {offsets = [0, 8], sizes = [16, 8], strides = [1, 1]} : vector<16x128xbf16> to vector<16x8xbf16>
    %cst_26 = arith.constant dense<0.000000e+00> : vector<16x16xf32>
    %82 = tpu.matmul %80, %81, %cst_26 {dimension_numbers = #tpu.dot_dimension_numbers<[1], [1], [0], [0], [0, 0, 1, 0], [], []>} : vector<16x8xbf16>, vector<16x8xbf16>, vector<16x16xf32> -> vector<16x16xf32>
    %83 = arith.addf %82, %62 : vector<16x16xf32>
    %cst_27 = arith.constant dense<0xFF800000> : vector<16xf32>
    %84 = vector.multi_reduction <maximumf>, %83, %cst_27 [1] : vector<16x16xf32> to vector<16xf32>
    %85 = vector.shape_cast %84 : vector<16xf32> to vector<16x1xf32>
    %86 = vector.broadcast %85 : vector<16x1xf32> to vector<16x16xf32>
    %87 = arith.subf %83, %86 : vector<16x16xf32>
    %88 = math.exp %87 : vector<16x16xf32>
    %cst_28 = arith.constant dense<0.000000e+00> : vector<16xf32>
    %89 = vector.multi_reduction <add>, %88, %cst_28 [1] : vector<16x16xf32> to vector<16xf32>
    %90 = vector.shape_cast %89 : vector<16xf32> to vector<16x1xf32>
    %91 = tpu.reciprocal %90 {approx = true} : vector<16x1xf32> -> vector<16x1xf32>
    %92 = vector.broadcast %91 : vector<16x1xf32> to vector<16x16xf32>
    %93 = arith.mulf %88, %92 : vector<16x16xf32>
    %94 = arith.truncf %93 : vector<16x16xf32> to vector<16x16xbf16>
    %95 = vector.extract_strided_slice %24 {offsets = [0, 8], sizes = [16, 8], strides = [1, 1]} : vector<16x128xbf16> to vector<16x8xbf16>
    %cst_29 = arith.constant dense<0.000000e+00> : vector<16x8xf32>
    %96 = tpu.matmul %94, %95, %cst_29 {dimension_numbers = #tpu.dot_dimension_numbers<[1], [0], [0], [1], [0, 0, 1, 1], [], []>} : vector<16x16xbf16>, vector<16x8xbf16>, vector<16x8xf32> -> vector<16x8xf32>
    %97 = vector.extract_strided_slice %22 {offsets = [0, 16], sizes = [16, 8], strides = [1, 1]} : vector<16x128xbf16> to vector<16x8xbf16>
    %98 = vector.extract_strided_slice %23 {offsets = [0, 16], sizes = [16, 8], strides = [1, 1]} : vector<16x128xbf16> to vector<16x8xbf16>
    %cst_30 = arith.constant dense<0.000000e+00> : vector<16x16xf32>
    %99 = tpu.matmul %97, %98, %cst_30 {dimension_numbers = #tpu.dot_dimension_numbers<[1], [1], [0], [0], [0, 0, 1, 0], [], []>} : vector<16x8xbf16>, vector<16x8xbf16>, vector<16x16xf32> -> vector<16x16xf32>
    %100 = arith.addf %99, %62 : vector<16x16xf32>
    %cst_31 = arith.constant dense<0xFF800000> : vector<16xf32>
    %101 = vector.multi_reduction <maximumf>, %100, %cst_31 [1] : vector<16x16xf32> to vector<16xf32>
    %102 = vector.shape_cast %101 : vector<16xf32> to vector<16x1xf32>
    %103 = vector.broadcast %102 : vector<16x1xf32> to vector<16x16xf32>
    %104 = arith.subf %100, %103 : vector<16x16xf32>
    %105 = math.exp %104 : vector<16x16xf32>
    %cst_32 = arith.constant dense<0.000000e+00> : vector<16xf32>
    %106 = vector.multi_reduction <add>, %105, %cst_32 [1] : vector<16x16xf32> to vector<16xf32>
    %107 = vector.shape_cast %106 : vector<16xf32> to vector<16x1xf32>
    %108 = tpu.reciprocal %107 {approx = true} : vector<16x1xf32> -> vector<16x1xf32>
    %109 = vector.broadcast %108 : vector<16x1xf32> to vector<16x16xf32>
    %110 = arith.mulf %105, %109 : vector<16x16xf32>
    %111 = arith.truncf %110 : vector<16x16xf32> to vector<16x16xbf16>
    %112 = vector.extract_strided_slice %24 {offsets = [0, 16], sizes = [16, 8], strides = [1, 1]} : vector<16x128xbf16> to vector<16x8xbf16>
    %cst_33 = arith.constant dense<0.000000e+00> : vector<16x8xf32>
    %113 = tpu.matmul %111, %112, %cst_33 {dimension_numbers = #tpu.dot_dimension_numbers<[1], [0], [0], [1], [0, 0, 1, 1], [], []>} : vector<16x16xbf16>, vector<16x8xbf16>, vector<16x8xf32> -> vector<16x8xf32>
    %114 = vector.extract_strided_slice %22 {offsets = [0, 24], sizes = [16, 8], strides = [1, 1]} : vector<16x128xbf16> to vector<16x8xbf16>
    %115 = vector.extract_strided_slice %23 {offsets = [0, 24], sizes = [16, 8], strides = [1, 1]} : vector<16x128xbf16> to vector<16x8xbf16>
    %cst_34 = arith.constant dense<0.000000e+00> : vector<16x16xf32>
    %116 = tpu.matmul %114, %115, %cst_34 {dimension_numbers = #tpu.dot_dimension_numbers<[1], [1], [0], [0], [0, 0, 1, 0], [], []>} : vector<16x8xbf16>, vector<16x8xbf16>, vector<16x16xf32> -> vector<16x16xf32>
    %117 = arith.addf %116, %62 : vector<16x16xf32>
    %cst_35 = arith.constant dense<0xFF800000> : vector<16xf32>
    %118 = vector.multi_reduction <maximumf>, %117, %cst_35 [1] : vector<16x16xf32> to vector<16xf32>
    %119 = vector.shape_cast %118 : vector<16xf32> to vector<16x1xf32>
    %120 = vector.broadcast %119 : vector<16x1xf32> to vector<16x16xf32>
    %121 = arith.subf %117, %120 : vector<16x16xf32>
    %122 = math.exp %121 : vector<16x16xf32>
    %cst_36 = arith.constant dense<0.000000e+00> : vector<16xf32>
    %123 = vector.multi_reduction <add>, %122, %cst_36 [1] : vector<16x16xf32> to vector<16xf32>
    %124 = vector.shape_cast %123 : vector<16xf32> to vector<16x1xf32>
    %125 = tpu.reciprocal %124 {approx = true} : vector<16x1xf32> -> vector<16x1xf32>
    %126 = vector.broadcast %125 : vector<16x1xf32> to vector<16x16xf32>
    %127 = arith.mulf %122, %126 : vector<16x16xf32>
    %128 = arith.truncf %127 : vector<16x16xf32> to vector<16x16xbf16>
    %129 = vector.extract_strided_slice %24 {offsets = [0, 24], sizes = [16, 8], strides = [1, 1]} : vector<16x128xbf16> to vector<16x8xbf16>
    %cst_37 = arith.constant dense<0.000000e+00> : vector<16x8xf32>
    %130 = tpu.matmul %128, %129, %cst_37 {dimension_numbers = #tpu.dot_dimension_numbers<[1], [0], [0], [1], [0, 0, 1, 1], [], []>} : vector<16x16xbf16>, vector<16x8xbf16>, vector<16x8xf32> -> vector<16x8xf32>
    %cst_38 = arith.constant 0.000000e+00 : f32
    %131 = vector.broadcast %cst_38 : f32 to vector<16x96xf32>
    %132 = tpu.concatenate %79, %96, %113, %130, %131 in 1 : vector<16x8xf32>, vector<16x8xf32>, vector<16x8xf32>, vector<16x8xf32>, vector<16x96xf32> -> vector<16x128xf32>
    %133 = arith.truncf %132 : vector<16x128xf32> to vector<16x128xbf16>
    %c384 = arith.constant 384 : index
    %c0_39 = arith.constant 0 : index
    %134 = vector.load %arg2[%c384, %c0_39] : memref<1280x128xbf16, #tpu.memory_space<vmem>>, vector<128x128xbf16>
    %cst_40 = arith.constant dense<0.000000e+00> : vector<16x128xf32>
    %135 = tpu.matmul %133, %134, %cst_40 {dimension_numbers = #tpu.dot_dimension_numbers<[1], [0], [0], [1], [0, 0, 1, 1], [], []>} : vector<16x128xbf16>, vector<128x128xbf16>, vector<16x128xf32> -> vector<16x128xf32>
    %c3 = arith.constant 3 : index
    %c0_41 = arith.constant 0 : index
    %136 = vector.load %arg3[%c3, %c0_41] : memref<16x128xf32, #tpu.memory_space<vmem>>, vector<1x128xf32>
    %137 = vector.broadcast %136 : vector<1x128xf32> to vector<16x128xf32>
    %138 = arith.addf %135, %137 : vector<16x128xf32>
    %139 = arith.addf %3, %138 : vector<16x128xf32>
    %cst_42 = arith.constant dense<0.000000e+00> : vector<16xf32>
    %140 = vector.multi_reduction <add>, %139, %cst_42 [1] : vector<16x128xf32> to vector<16xf32>
    %141 = vector.shape_cast %140 : vector<16xf32> to vector<16x1xf32>
    %cst_43 = arith.constant 3.125000e-02 : f32
    %142 = vector.broadcast %cst_43 : f32 to vector<16x1xf32>
    %143 = arith.mulf %141, %142 : vector<16x1xf32>
    %144 = vector.broadcast %143 : vector<16x1xf32> to vector<16x128xf32>
    %145 = arith.subf %139, %144 : vector<16x128xf32>
    %cst_44 = arith.constant 0.000000e+00 : f32
    %146 = vector.shape_cast %2 : vector<1x128xi1> to vector<1x128xi1>
    %147 = vector.broadcast %146 : vector<1x128xi1> to vector<16x128xi1>
    %148 = vector.broadcast %cst_44 : f32 to vector<16x128xf32>
    %149 = arith.select %147, %145, %148 : vector<16x128xi1>, vector<16x128xf32>
    %150 = arith.mulf %149, %149 : vector<16x128xf32>
    %cst_45 = arith.constant dense<0.000000e+00> : vector<16xf32>
    %151 = vector.multi_reduction <add>, %150, %cst_45 [1] : vector<16x128xf32> to vector<16xf32>
    %152 = vector.shape_cast %151 : vector<16xf32> to vector<16x1xf32>
    %cst_46 = arith.constant 3.125000e-02 : f32
    %153 = vector.broadcast %cst_46 : f32 to vector<16x1xf32>
    %154 = arith.mulf %152, %153 : vector<16x1xf32>
    %cst_47 = arith.constant 9.99999974E-6 : f32
    %155 = vector.broadcast %cst_47 : f32 to vector<16x1xf32>
    %156 = arith.addf %154, %155 : vector<16x1xf32>
    %157 = math.rsqrt %156 : vector<16x1xf32>
    %158 = vector.broadcast %157 : vector<16x1xf32> to vector<16x128xf32>
    %159 = arith.mulf %149, %158 : vector<16x128xf32>
    %c4 = arith.constant 4 : index
    %c0_48 = arith.constant 0 : index
    %160 = vector.load %arg3[%c4, %c0_48] : memref<16x128xf32, #tpu.memory_space<vmem>>, vector<1x128xf32>
    %161 = vector.broadcast %160 : vector<1x128xf32> to vector<16x128xf32>
    %162 = arith.mulf %159, %161 : vector<16x128xf32>
    %c5 = arith.constant 5 : index
    %c0_49 = arith.constant 0 : index
    %163 = vector.load %arg3[%c5, %c0_49] : memref<16x128xf32, #tpu.memory_space<vmem>>, vector<1x128xf32>
    %164 = vector.broadcast %163 : vector<1x128xf32> to vector<16x128xf32>
    %165 = arith.addf %162, %164 : vector<16x128xf32>
    %166 = arith.truncf %165 : vector<16x128xf32> to vector<16x128xbf16>
    %c512 = arith.constant 512 : index
    %c0_50 = arith.constant 0 : index
    %167 = vector.load %arg2[%c512, %c0_50] : memref<1280x128xbf16, #tpu.memory_space<vmem>>, vector<128x128xbf16>
    %cst_51 = arith.constant dense<0.000000e+00> : vector<16x128xf32>
    %168 = tpu.matmul %166, %167, %cst_51 {dimension_numbers = #tpu.dot_dimension_numbers<[1], [0], [0], [1], [0, 0, 1, 1], [], []>} : vector<16x128xbf16>, vector<128x128xbf16>, vector<16x128xf32> -> vector<16x128xf32>
    %c6 = arith.constant 6 : index
    %c0_52 = arith.constant 0 : index
    %169 = vector.load %arg3[%c6, %c0_52] : memref<16x128xf32, #tpu.memory_space<vmem>>, vector<1x128xf32>
    %170 = vector.broadcast %169 : vector<1x128xf32> to vector<16x128xf32>
    %171 = arith.addf %168, %170 : vector<16x128xf32>
    %cst_53 = arith.constant 5.000000e-01 : f32
    %172 = vector.broadcast %cst_53 : f32 to vector<16x128xf32>
    %173 = arith.mulf %172, %171 : vector<16x128xf32>
    %cst_54 = arith.constant 0.707106769 : f32
    %174 = vector.broadcast %cst_54 : f32 to vector<16x128xf32>
    %175 = arith.mulf %171, %174 : vector<16x128xf32>
    %cst_55 = arith.constant 0.000000e+00 : f32
    %176 = vector.broadcast %cst_55 : f32 to vector<16x128xf32>
    %177 = arith.cmpf oge, %175, %176 : vector<16x128xf32>
    %cst_56 = arith.constant 1.000000e+00 : f32
    %cst_57 = arith.constant -1.000000e+00 : f32
    %178 = vector.broadcast %cst_56 : f32 to vector<16x128xf32>
    %179 = vector.broadcast %cst_57 : f32 to vector<16x128xf32>
    %180 = arith.select %177, %178, %179 : vector<16x128xi1>, vector<16x128xf32>
    %181 = math.absf %175 : vector<16x128xf32>
    %cst_58 = arith.constant 0.327591091 : f32
    %182 = vector.broadcast %cst_58 : f32 to vector<16x128xf32>
    %183 = arith.mulf %182, %181 : vector<16x128xf32>
    %cst_59 = arith.constant 1.000000e+00 : f32
    %184 = vector.broadcast %cst_59 : f32 to vector<16x128xf32>
    %185 = arith.addf %184, %183 : vector<16x128xf32>
    %cst_60 = arith.constant 1.000000e+00 : f32
    %186 = vector.broadcast %cst_60 : f32 to vector<16x128xf32>
    %187 = arith.divf %186, %185 : vector<16x128xf32>
    %cst_61 = arith.constant 1.06140542 : f32
    %188 = vector.broadcast %cst_61 : f32 to vector<16x128xf32>
    %189 = arith.mulf %188, %187 : vector<16x128xf32>
    %cst_62 = arith.constant -1.45315206 : f32
    %190 = vector.broadcast %cst_62 : f32 to vector<16x128xf32>
    %191 = arith.addf %189, %190 : vector<16x128xf32>
    %192 = arith.mulf %191, %187 : vector<16x128xf32>
    %cst_63 = arith.constant 1.42141378 : f32
    %193 = vector.broadcast %cst_63 : f32 to vector<16x128xf32>
    %194 = arith.addf %192, %193 : vector<16x128xf32>
    %195 = arith.mulf %194, %187 : vector<16x128xf32>
    %cst_64 = arith.constant -0.284496725 : f32
    %196 = vector.broadcast %cst_64 : f32 to vector<16x128xf32>
    %197 = arith.addf %195, %196 : vector<16x128xf32>
    %198 = arith.mulf %197, %187 : vector<16x128xf32>
    %cst_65 = arith.constant 0.254829586 : f32
    %199 = vector.broadcast %cst_65 : f32 to vector<16x128xf32>
    %200 = arith.addf %198, %199 : vector<16x128xf32>
    %201 = arith.mulf %200, %187 : vector<16x128xf32>
    %cst_66 = arith.constant 0.000000e+00 : f32
    %202 = vector.broadcast %cst_66 : f32 to vector<16x128xf32>
    %203 = arith.subf %202, %181 : vector<16x128xf32>
    %204 = arith.mulf %203, %181 : vector<16x128xf32>
    %205 = math.exp %204 : vector<16x128xf32>
    %206 = arith.mulf %201, %205 : vector<16x128xf32>
    %cst_67 = arith.constant 1.000000e+00 : f32
    %207 = vector.broadcast %cst_67 : f32 to vector<16x128xf32>
    %208 = arith.subf %207, %206 : vector<16x128xf32>
    %209 = arith.mulf %180, %208 : vector<16x128xf32>
    %cst_68 = arith.constant 1.000000e+00 : f32
    %210 = vector.broadcast %cst_68 : f32 to vector<16x128xf32>
    %211 = arith.addf %210, %209 : vector<16x128xf32>
    %212 = arith.mulf %173, %211 : vector<16x128xf32>
    %213 = arith.truncf %212 : vector<16x128xf32> to vector<16x128xbf16>
    %c640 = arith.constant 640 : index
    %c0_69 = arith.constant 0 : index
    %214 = vector.load %arg2[%c640, %c0_69] : memref<1280x128xbf16, #tpu.memory_space<vmem>>, vector<128x128xbf16>
    %cst_70 = arith.constant dense<0.000000e+00> : vector<16x128xf32>
    %215 = tpu.matmul %213, %214, %cst_70 {dimension_numbers = #tpu.dot_dimension_numbers<[1], [0], [0], [1], [0, 0, 1, 1], [], []>} : vector<16x128xbf16>, vector<128x128xbf16>, vector<16x128xf32> -> vector<16x128xf32>
    %c7 = arith.constant 7 : index
    %c0_71 = arith.constant 0 : index
    %216 = vector.load %arg3[%c7, %c0_71] : memref<16x128xf32, #tpu.memory_space<vmem>>, vector<1x128xf32>
    %217 = vector.broadcast %216 : vector<1x128xf32> to vector<16x128xf32>
    %218 = arith.addf %215, %217 : vector<16x128xf32>
    %219 = arith.addf %165, %218 : vector<16x128xf32>
    %cst_72 = arith.constant dense<0.000000e+00> : vector<16xf32>
    %220 = vector.multi_reduction <add>, %219, %cst_72 [1] : vector<16x128xf32> to vector<16xf32>
    %221 = vector.shape_cast %220 : vector<16xf32> to vector<16x1xf32>
    %cst_73 = arith.constant 3.125000e-02 : f32
    %222 = vector.broadcast %cst_73 : f32 to vector<16x1xf32>
    %223 = arith.mulf %221, %222 : vector<16x1xf32>
    %224 = vector.broadcast %223 : vector<16x1xf32> to vector<16x128xf32>
    %225 = arith.subf %219, %224 : vector<16x128xf32>
    %cst_74 = arith.constant 0.000000e+00 : f32
    %226 = vector.shape_cast %2 : vector<1x128xi1> to vector<1x128xi1>
    %227 = vector.broadcast %226 : vector<1x128xi1> to vector<16x128xi1>
    %228 = vector.broadcast %cst_74 : f32 to vector<16x128xf32>
    %229 = arith.select %227, %225, %228 : vector<16x128xi1>, vector<16x128xf32>
    %230 = arith.mulf %229, %229 : vector<16x128xf32>
    %cst_75 = arith.constant dense<0.000000e+00> : vector<16xf32>
    %231 = vector.multi_reduction <add>, %230, %cst_75 [1] : vector<16x128xf32> to vector<16xf32>
    %232 = vector.shape_cast %231 : vector<16xf32> to vector<16x1xf32>
    %cst_76 = arith.constant 3.125000e-02 : f32
    %233 = vector.broadcast %cst_76 : f32 to vector<16x1xf32>
    %234 = arith.mulf %232, %233 : vector<16x1xf32>
    %cst_77 = arith.constant 9.99999974E-6 : f32
    %235 = vector.broadcast %cst_77 : f32 to vector<16x1xf32>
    %236 = arith.addf %234, %235 : vector<16x1xf32>
    %237 = math.rsqrt %236 : vector<16x1xf32>
    %238 = vector.broadcast %237 : vector<16x1xf32> to vector<16x128xf32>
    %239 = arith.mulf %229, %238 : vector<16x128xf32>
    %c8 = arith.constant 8 : index
    %c0_78 = arith.constant 0 : index
    %240 = vector.load %arg3[%c8, %c0_78] : memref<16x128xf32, #tpu.memory_space<vmem>>, vector<1x128xf32>
    %241 = vector.broadcast %240 : vector<1x128xf32> to vector<16x128xf32>
    %242 = arith.mulf %239, %241 : vector<16x128xf32>
    %c9 = arith.constant 9 : index
    %c0_79 = arith.constant 0 : index
    %243 = vector.load %arg3[%c9, %c0_79] : memref<16x128xf32, #tpu.memory_space<vmem>>, vector<1x128xf32>
    %244 = vector.broadcast %243 : vector<1x128xf32> to vector<16x128xf32>
    %245 = arith.addf %242, %244 : vector<16x128xf32>
    %246 = arith.truncf %245 : vector<16x128xf32> to vector<16x128xbf16>
    %c768 = arith.constant 768 : index
    %c0_80 = arith.constant 0 : index
    %247 = vector.load %arg2[%c768, %c0_80] : memref<1280x128xbf16, #tpu.memory_space<vmem>>, vector<128x128xbf16>
    %cst_81 = arith.constant dense<0.000000e+00> : vector<16x128xf32>
    %248 = tpu.matmul %246, %247, %cst_81 {dimension_numbers = #tpu.dot_dimension_numbers<[1], [0], [0], [1], [0, 0, 1, 1], [], []>} : vector<16x128xbf16>, vector<128x128xbf16>, vector<16x128xf32> -> vector<16x128xf32>
    %c10 = arith.constant 10 : index
    %c0_82 = arith.constant 0 : index
    %249 = vector.load %arg3[%c10, %c0_82] : memref<16x128xf32, #tpu.memory_space<vmem>>, vector<1x128xf32>
    %250 = vector.broadcast %249 : vector<1x128xf32> to vector<16x128xf32>
    %251 = arith.addf %248, %250 : vector<16x128xf32>
    %cst_83 = arith.constant 0.000000e+00 : f32
    %252 = vector.broadcast %cst_83 : f32 to vector<16x128xf32>
    %253 = arith.maximumf %251, %252 : vector<16x128xf32>
    %254 = arith.truncf %253 : vector<16x128xf32> to vector<16x128xbf16>
    %c896 = arith.constant 896 : index
    %c0_84 = arith.constant 0 : index
    %255 = vector.load %arg2[%c896, %c0_84] : memref<1280x128xbf16, #tpu.memory_space<vmem>>, vector<128x128xbf16>
    %cst_85 = arith.constant dense<0.000000e+00> : vector<16x128xf32>
    %256 = tpu.matmul %254, %255, %cst_85 {dimension_numbers = #tpu.dot_dimension_numbers<[1], [0], [0], [1], [0, 0, 1, 1], [], []>} : vector<16x128xbf16>, vector<128x128xbf16>, vector<16x128xf32> -> vector<16x128xf32>
    %c11 = arith.constant 11 : index
    %c0_86 = arith.constant 0 : index
    %257 = vector.load %arg3[%c11, %c0_86] : memref<16x128xf32, #tpu.memory_space<vmem>>, vector<1x128xf32>
    %258 = vector.broadcast %257 : vector<1x128xf32> to vector<16x128xf32>
    %259 = arith.addf %256, %258 : vector<16x128xf32>
    %cst_87 = arith.constant 0.000000e+00 : f32
    %260 = vector.broadcast %cst_87 : f32 to vector<16x128xf32>
    %261 = arith.maximumf %259, %260 : vector<16x128xf32>
    %262 = arith.truncf %261 : vector<16x128xf32> to vector<16x128xbf16>
    %c1024 = arith.constant 1024 : index
    %c0_88 = arith.constant 0 : index
    %263 = vector.load %arg2[%c1024, %c0_88] : memref<1280x128xbf16, #tpu.memory_space<vmem>>, vector<128x128xbf16>
    %cst_89 = arith.constant dense<0.000000e+00> : vector<16x128xf32>
    %264 = tpu.matmul %262, %263, %cst_89 {dimension_numbers = #tpu.dot_dimension_numbers<[1], [0], [0], [1], [0, 0, 1, 1], [], []>} : vector<16x128xbf16>, vector<128x128xbf16>, vector<16x128xf32> -> vector<16x128xf32>
    %c12 = arith.constant 12 : index
    %c0_90 = arith.constant 0 : index
    %265 = vector.load %arg3[%c12, %c0_90] : memref<16x128xf32, #tpu.memory_space<vmem>>, vector<1x128xf32>
    %266 = vector.broadcast %265 : vector<1x128xf32> to vector<16x128xf32>
    %267 = arith.addf %264, %266 : vector<16x128xf32>
    %268 = arith.truncf %267 : vector<16x128xf32> to vector<16x128xbf16>
    %c1152 = arith.constant 1152 : index
    %c0_91 = arith.constant 0 : index
    %269 = vector.load %arg2[%c1152, %c0_91] : memref<1280x128xbf16, #tpu.memory_space<vmem>>, vector<128x128xbf16>
    %cst_92 = arith.constant dense<0.000000e+00> : vector<16x128xf32>
    %270 = tpu.matmul %268, %269, %cst_92 {dimension_numbers = #tpu.dot_dimension_numbers<[1], [0], [0], [1], [0, 0, 1, 1], [], []>} : vector<16x128xbf16>, vector<128x128xbf16>, vector<16x128xf32> -> vector<16x128xf32>
    %c13 = arith.constant 13 : index
    %c0_93 = arith.constant 0 : index
    %271 = vector.load %arg3[%c13, %c0_93] : memref<16x128xf32, #tpu.memory_space<vmem>>, vector<1x128xf32>
    %272 = vector.broadcast %271 : vector<1x128xf32> to vector<16x128xf32>
    %273 = arith.addf %270, %272 : vector<16x128xf32>
    %274 = arith.addf %267, %273 : vector<16x128xf32>
    %c0_94 = arith.constant 0 : index
    %c0_95 = arith.constant 0 : index
    %275 = vector.load %arg4[%c0_94, %c0_95] : memref<16x128xf32, #tpu.memory_space<vmem>>, vector<16x128xf32>
    tpu.vector_store %arg4[%c0_94, %c0_95], %274 {strides = array<i32>} : memref<16x128xf32, #tpu.memory_space<vmem>>, vector<16x128xf32>,
    return
  }
  func.func @transform_0(%arg0: i32) -> (i32, i32) {
    %c0_i32 = arith.constant 0 : i32
    %c0_i32_0 = arith.constant 0 : i32
    %c0_i32_1 = arith.constant 0 : i32
    return %c0_i32, %c0_i32_0 : i32, i32
  }
  func.func @transform_1(%arg0: i32) -> (i32, i32) {
    %c0_i32 = arith.constant 0 : i32
    %c0_i32_0 = arith.constant 0 : i32
    %c0_i32_1 = arith.constant 0 : i32
    return %c0_i32, %c0_i32_0 : i32, i32
  }
  func.func @transform_2(%arg0: i32) -> (i32, i32) {
    %c0_i32 = arith.constant 0 : i32
    %c0_i32_0 = arith.constant 0 : i32
    %c0_i32_1 = arith.constant 0 : i32
    return %c0_i32, %c0_i32_0 : i32, i32
  }
  func.func @transform_3(%arg0: i32) -> (i32, i32) {
    %c0_i32 = arith.constant 0 : i32
    %c0_i32_0 = arith.constant 0 : i32
    %c0_i32_1 = arith.constant 0 : i32
    return %c0_i32, %c0_i32_0 : i32, i32
  }
}

</mosaic_0001>

<llo_original>
// kernel: tfmlp_forward.1
$region0: #{tfmlp_forward.1}
  #allocation0 [shape = 'u32[]', space=smem, size = 0x4, offset = 0x4, fixed_abs, tag = 'smem constant byte address 0x4 - core index']
  #allocation1 [shape = 'u32[144,128]{1,0:T(1,128)}', space=vmem, size = 0x12000, scoped, tag = 'internal scratch']
  %s0 = inlined_call_operand.vmem [shape: f32[16,128], index: 0, kind: input, shape index: {}]
  %s1 = inlined_call_operand.hbm [shape: bf16[1280,128], index: 1, kind: input, shape index: {}]
  %s2 = inlined_call_operand.vmem [shape: f32[16,128], index: 2, kind: input, shape index: {}]
  %s3 = inlined_call_operand.vmem [shape: f32[16,128], index: 3, kind: output, shape index: {}]
  %s4 = sld [smem:[#allocation0]]
  $region26: #{tfmlp_forward.1} parent=0
    _
  %s6 = ssub.s32 1, %s4
  %s7 = scalar_select 0, %s6, %s4
  $region1: #{tfmlp_forward.1} parent=0
    #allocation2 [shape = 'u8[327680]{0}', space=vmem, size = 0x50000, scoped, tag = 'input window, operand 1, single buffered']
    #allocation3 [shape = 's32[1]{0}', space=sflag, size = 0x4, scoped, tag = 'scoped memory for tfmlp_forward.1']
    %8 = vsyncpa [#allocation3], 0
    // Predicated region
    $region2: #{tfmlp_forward.1} parent=1 // pred_check
      _
    $region3: #{tfmlp_forward.1} parent=1 // pred_check_branch
      %10 = sbr.rel (0) target = $region5
    $region4: #{tfmlp_forward.1} parent=1 // pred_region
      _
    $region5: #{tfmlp_forward.1} parent=1 // pred_fallthru
      _
    // Predicated region
    $region6: #{tfmlp_forward.1} parent=1 // pred_check
      _
    $region7: #{tfmlp_forward.1} parent=1 // pred_check_branch
      %12 = sbr.rel (0) target = $region9
    $region8: #{tfmlp_forward.1} parent=1 // pred_region
      %s14 = ssub.s32 10240, 10240
      %15 = vsyncadd [#allocation3], %s14
      %s16 = sshll.u32 [#allocation2], 4
      %s17 = int_to_ptr.vmem [resolvable:$true] %s16
      %22 = dma.hbm_to_vmem [thread:$0]  %s1, 10240, %s17, [#allocation3], 64, 64, 4
    $region9: #{tfmlp_forward.1} parent=1 // pred_fallthru
      _
    // Predicated region
    $region10: #{tfmlp_forward.1} parent=1 // pred_check
      _
    $region11: #{tfmlp_forward.1} parent=1 // pred_check_branch
      %24 = sbr.rel (0) target = $region13
    $region12: #{tfmlp_forward.1} parent=1 // pred_region
      _
    $region13: #{tfmlp_forward.1} parent=1 // pred_fallthru
      _
    // Predicated region
    $region14: #{tfmlp_forward.1} parent=1 // pred_check
      _
    $region15: #{tfmlp_forward.1} parent=1 // pred_check_branch
      %26 = sbr.rel (0) target = $region17
    $region16: #{tfmlp_forward.1} parent=1 // pred_region
      %27 = dma.done [#allocation3], 10240
    $region17: #{tfmlp_forward.1} parent=1 // pred_fallthru
      _
    %v29 = vlaneseq
    %v30 = vand.u32 %v29, 127
    %vm31 = vcmp.lt.s32.totalorder %v30, 32
    %v32 = vld [vmem:[%s0] sm:$0xff]
    %v33 = vld [vmem:[%s0 + $0x8] sm:$0xff]
    %v34 = vpack.c.bf16 %v33, %v32
    %v35 = vld [vmem:[#allocation2] sm:$0xf]
    %v36 = vld [vmem:[#allocation2 + $0x4] sm:$0xf]
    %v37 = vld [vmem:[#allocation2 + $0x8] sm:$0xf]
    %v38 = vld [vmem:[#allocation2 + $0xc] sm:$0xf]
    %v39 = vld [vmem:[#allocation2 + $0x10] sm:$0xf]
    %v40 = vld [vmem:[#allocation2 + $0x14] sm:$0xf]
    %v41 = vld [vmem:[#allocation2 + $0x18] sm:$0xf]
    %v42 = vld [vmem:[#allocation2 + $0x1c] sm:$0xf]
    %v43 = vld [vmem:[#allocation2 + $0x20] sm:$0xf]
    %v44 = vld [vmem:[#allocation2 + $0x24] sm:$0xf]
    %v45 = vld [vmem:[#allocation2 + $0x28] sm:$0xf]
    %v46 = vld [vmem:[#allocation2 + $0x2c] sm:$0xf]
    %v47 = vld [vmem:[#allocation2 + $0x30] sm:$0xf]
    %v48 = vld [vmem:[#allocation2 + $0x34] sm:$0xf]
    %v49 = vld [vmem:[#allocation2 + $0x38] sm:$0xf]
    %v50 = vld [vmem:[#allocation2 + $0x3c] sm:$0xf]
    %v51 = vld [vmem:[%s2] sm:$0x1]
    %v52 = vlaneseq
    %v53 = vshrl.u32 %v52, 7
    %v54 = vsub.s32 0, %v53
    %v55 = vrot.slane %v51, %v54
    %v72 = vunpack.c.l.b16 %v35
    %v73 = vunpack.c.l.b16 %v36
    %v74 = vunpack.c.l.b16 %v37
    %v75 = vunpack.c.l.b16 %v38
    %v76 = vunpack.c.l.b16 %v39
    %v77 = vunpack.c.l.b16 %v40
    %v78 = vunpack.c.l.b16 %v41
    %v79 = vunpack.c.l.b16 %v42
    %v80 = vunpack.c.l.b16 %v43
    %v81 = vunpack.c.l.b16 %v44
    %v82 = vunpack.c.l.b16 %v45
    %v83 = vunpack.c.l.b16 %v46
    %v84 = vunpack.c.l.b16 %v47
    %v85 = vunpack.c.l.b16 %v48
    %v86 = vunpack.c.l.b16 %v49
    %v87 = vunpack.c.l.b16 %v50
    %v88 = vpack.c.b16 %v73, %v72
    %v89 = vpack.c.b16 %v75, %v74
    %v90 = vpack.c.b16 %v77, %v76
    %v91 = vpack.c.b16 %v79, %v78
    %v92 = vpack.c.b16 %v81, %v80
    %v93 = vpack.c.b16 %v83, %v82
    %v94 = vpack.c.b16 %v85, %v84
    %v95 = vpack.c.b16 %v87, %v86
    %104 = vmatprep.subr.bf16.mxu0 0
    %105 = vmatpush1.bf16.msra.mxu0 %v88
    %106 = vmatprep.subr.bf16.mxu0 0
    %107 = vmatpush1.bf16.msra.mxu0 %v89
    %108 = vmatprep.subr.bf16.mxu0 0
    %109 = vmatpush1.bf16.msra.mxu0 %v90
    %110 = vmatprep.subr.bf16.mxu0 0
    %111 = vmatpush1.bf16.msra.mxu0 %v91
    %112 = vmatprep.subr.bf16.mxu0 0
    %113 = vmatpush1.bf16.msra.mxu0 %v92
    %114 = vmatprep.subr.bf16.mxu0 0
    %115 = vmatpush1.bf16.msra.mxu0 %v93
    %116 = vmatprep.subr.bf16.mxu0 0
    %117 = vmatpush1.bf16.msra.mxu0 %v94
    %118 = vmatprep.subr.bf16.mxu0 0
    %119 = vmatpush1.bf16.msra.mxu0 %v95
    %120 = vmatprep.subr.bf16.mxu0 0
    %121 = vmatpush1.bf16.msra.mxu0 0
    %122 = vmatprep.subr.bf16.mxu0 0
    %123 = vmatpush1.bf16.msra.mxu0 0
    %124 = vmatprep.subr.bf16.mxu0 0
    %125 = vmatpush1.bf16.msra.mxu0 0
    %126 = vmatprep.subr.bf16.mxu0 0
    %127 = vmatpush1.bf16.msra.mxu0 0
    %128 = vmatprep.subr.bf16.mxu0 0
    %129 = vmatpush1.bf16.msra.mxu0 0
    %130 = vmatprep.subr.bf16.mxu0 0
    %131 = vmatpush1.bf16.msra.mxu0 0
    %132 = vmatprep.subr.bf16.mxu0 0
    %133 = vmatpush1.bf16.msra.mxu0 0
    %134 = vmatprep.subr.bf16.mxu0 0
    %135 = vmatpush1.bf16.msra.mxu0 0
    %136 = vmatprep.mubr.bf16.mxu0 0
    %137 = vmatmul.mubr.bf16.gmra.mrb[0].mxu0 %v34
    %v138 = vpop.f32.mrb[0].mxu0
    %v139 = vadd.f32 %v55, %v138
    %v140 = vpop.f32.mrb[0].mxu0
    %v141 = vpop.f32.mrb[0].mxu0
    %v142 = vadd.f32 %v55, %v141
    %v143 = vpop.f32.mrb[0].mxu0
    %144 = vdwg.mxu0
    %v145 = vld [vmem:[#allocation2 + $0x40] sm:$0xf]
    %v146 = vld [vmem:[#allocation2 + $0x44] sm:$0xf]
    %v147 = vld [vmem:[#allocation2 + $0x48] sm:$0xf]
    %v148 = vld [vmem:[#allocation2 + $0x4c] sm:$0xf]
    %v149 = vld [vmem:[#allocation2 + $0x50] sm:$0xf]
    %v150 = vld [vmem:[#allocation2 + $0x54] sm:$0xf]
    %v151 = vld [vmem:[#allocation2 + $0x58] sm:$0xf]
    %v152 = vld [vmem:[#allocation2 + $0x5c] sm:$0xf]
    %v153 = vld [vmem:[#allocation2 + $0x60] sm:$0xf]
    %v154 = vld [vmem:[#allocation2 + $0x64] sm:$0xf]
    %v155 = vld [vmem:[#allocation2 + $0x68] sm:$0xf]
    %v156 = vld [vmem:[#allocation2 + $0x6c] sm:$0xf]
    %v157 = vld [vmem:[#allocation2 + $0x70] sm:$0xf]
    %v158 = vld [vmem:[#allocation2 + $0x74] sm:$0xf]
    %v159 = vld [vmem:[#allocation2 + $0x78] sm:$0xf]
    %v160 = vld [vmem:[#allocation2 + $0x7c] sm:$0xf]
    %v161 = vld [vmem:[%s2 + $0x1] sm:$0x1]
    %v162 = vlaneseq
    %v163 = vshrl.u32 %v162, 7
    %v164 = vsub.s32 0, %v163
    %v165 = vrot.slane %v161, %v164
    %v182 = vunpack.c.l.b16 %v145
    %v183 = vunpack.c.l.b16 %v146
    %v184 = vunpack.c.l.b16 %v147
    %v185 = vunpack.c.l.b16 %v148
    %v186 = vunpack.c.l.b16 %v149
    %v187 = vunpack.c.l.b16 %v150
    %v188 = vunpack.c.l.b16 %v151
    %v189 = vunpack.c.l.b16 %v152
    %v190 = vunpack.c.l.b16 %v153
    %v191 = vunpack.c.l.b16 %v154
    %v192 = vunpack.c.l.b16 %v155
    %v193 = vunpack.c.l.b16 %v156
    %v194 = vunpack.c.l.b16 %v157
    %v195 = vunpack.c.l.b16 %v158
    %v196 = vunpack.c.l.b16 %v159
    %v197 = vunpack.c.l.b16 %v160
    %v198 = vpack.c.b16 %v183, %v182
    %v199 = vpack.c.b16 %v185, %v184
    %v200 = vpack.c.b16 %v187, %v186
    %v201 = vpack.c.b16 %v189, %v188
    %v202 = vpack.c.b16 %v191, %v190
    %v203 = vpack.c.b16 %v193, %v192
    %v204 = vpack.c.b16 %v195, %v194
    %v205 = vpack.c.b16 %v197, %v196
    %214 = vmatprep.subr.bf16.mxu0 0
    %215 = vmatpush1.bf16.msra.mxu0 %v198
    %216 = vmatprep.subr.bf16.mxu0 0
    %217 = vmatpush1.bf16.msra.mxu0 %v199
    %218 = vmatprep.subr.bf16.mxu0 0
    %219 = vmatpush1.bf16.msra.mxu0 %v200
    %220 = vmatprep.subr.bf16.mxu0 0
    %221 = vmatpush1.bf16.msra.mxu0 %v201
    %222 = vmatprep.subr.bf16.mxu0 0
    %223 = vmatpush1.bf16.msra.mxu0 %v202
    %224 = vmatprep.subr.bf16.mxu0 0
    %225 = vmatpush1.bf16.msra.mxu0 %v203
    %226 = vmatprep.subr.bf16.mxu0 0
    %227 = vmatpush1.bf16.msra.mxu0 %v204
    %228 = vmatprep.subr.bf16.mxu0 0
    %229 = vmatpush1.bf16.msra.mxu0 %v205
    %230 = vmatprep.subr.bf16.mxu0 0
    %231 = vmatpush1.bf16.msra.mxu0 0
    %232 = vmatprep.subr.bf16.mxu0 0
    %233 = vmatpush1.bf16.msra.mxu0 0
    %234 = vmatprep.subr.bf16.mxu0 0
    %235 = vmatpush1.bf16.msra.mxu0 0
    %236 = vmatprep.subr.bf16.mxu0 0
    %237 = vmatpush1.bf16.msra.mxu0 0
    %238 = vmatprep.subr.bf16.mxu0 0
    %239 = vmatpush1.bf16.msra.mxu0 0
    %240 = vmatprep.subr.bf16.mxu0 0
    %241 = vmatpush1.bf16.msra.mxu0 0
    %242 = vmatprep.subr.bf16.mxu0 0
    %243 = vmatpush1.bf16.msra.mxu0 0
    %244 = vmatprep.subr.bf16.mxu0 0
    %245 = vmatpush1.bf16.msra.mxu0 0
    %246 = vmatprep.mubr.bf16.mxu0 0
    %247 = vmatmul.mubr.bf16.gmra.mrb[0].mxu0 %v34
    %v248 = vpop.f32.mrb[0].mxu0
    %v249 = vadd.f32 %v165, %v248
    %v250 = vpop.f32.mrb[0].mxu0
    %v251 = vpop.f32.mrb[0].mxu0
    %v252 = vadd.f32 %v165, %v251
    %v253 = vpop.f32.mrb[0].mxu0
    %254 = vdwg.mxu0
    %v255 = vld [vmem:[#allocation2 + $0x80] sm:$0xf]
    %v256 = vld [vmem:[#allocation2 + $0x84] sm:$0xf]
    %v257 = vld [vmem:[#allocation2 + $0x88] sm:$0xf]
    %v258 = vld [vmem:[#allocation2 + $0x8c] sm:$0xf]
    %v259 = vld [vmem:[#allocation2 + $0x90] sm:$0xf]
    %v260 = vld [vmem:[#allocation2 + $0x94] sm:$0xf]
    %v261 = vld [vmem:[#allocation2 + $0x98] sm:$0xf]
    %v262 = vld [vmem:[#allocation2 + $0x9c] sm:$0xf]
    %v263 = vld [vmem:[#allocation2 + $0xa0] sm:$0xf]
    %v264 = vld [vmem:[#allocation2 + $0xa4] sm:$0xf]
    %v265 = vld [vmem:[#allocation2 + $0xa8] sm:$0xf]
    %v266 = vld [vmem:[#allocation2 + $0xac] sm:$0xf]
    %v267 = vld [vmem:[#allocation2 + $0xb0] sm:$0xf]
    %v268 = vld [vmem:[#allocation2 + $0xb4] sm:$0xf]
    %v269 = vld [vmem:[#allocation2 + $0xb8] sm:$0xf]
    %v270 = vld [vmem:[#allocation2 + $0xbc] sm:$0xf]
    %v271 = vld [vmem:[%s2 + $0x2] sm:$0x1]
    %v272 = vlaneseq
    %v273 = vshrl.u32 %v272, 7
    %v274 = vsub.s32 0, %v273
    %v275 = vrot.slane %v271, %v274
    %v292 = vunpack.c.l.b16 %v255
    %v293 = vunpack.c.l.b16 %v256
    %v294 = vunpack.c.l.b16 %v257
    %v295 = vunpack.c.l.b16 %v258
    %v296 = vunpack.c.l.b16 %v259
    %v297 = vunpack.c.l.b16 %v260
    %v298 = vunpack.c.l.b16 %v261
    %v299 = vunpack.c.l.b16 %v262
    %v300 = vunpack.c.l.b16 %v263
    %v301 = vunpack.c.l.b16 %v264
    %v302 = vunpack.c.l.b16 %v265
    %v303 = vunpack.c.l.b16 %v266
    %v304 = vunpack.c.l.b16 %v267
    %v305 = vunpack.c.l.b16 %v268
    %v306 = vunpack.c.l.b16 %v269
    %v307 = vunpack.c.l.b16 %v270
    %v308 = vpack.c.b16 %v293, %v292
    %v309 = vpack.c.b16 %v295, %v294
    %v310 = vpack.c.b16 %v297, %v296
    %v311 = vpack.c.b16 %v299, %v298
    %v312 = vpack.c.b16 %v301, %v300
    %v313 = vpack.c.b16 %v303, %v302
    %v314 = vpack.c.b16 %v305, %v304
    %v315 = vpack.c.b16 %v307, %v306
    %324 = vmatprep.subr.bf16.mxu0 0
    %325 = vmatpush1.bf16.msra.mxu0 %v308
    %326 = vmatprep.subr.bf16.mxu0 0
    %327 = vmatpush1.bf16.msra.mxu0 %v309
    %328 = vmatprep.subr.bf16.mxu0 0
    %329 = vmatpush1.bf16.msra.mxu0 %v310
    %330 = vmatprep.subr.bf16.mxu0 0
    %331 = vmatpush1.bf16.msra.mxu0 %v311
    %332 = vmatprep.subr.bf16.mxu0 0
    %333 = vmatpush1.bf16.msra.mxu0 %v312
    %334 = vmatprep.subr.bf16.mxu0 0
    %335 = vmatpush1.bf16.msra.mxu0 %v313
    %336 = vmatprep.subr.bf16.mxu0 0
    %337 = vmatpush1.bf16.msra.mxu0 %v314
    %338 = vmatprep.subr.bf16.mxu0 0
    %339 = vmatpush1.bf16.msra.mxu0 %v315
    %340 = vmatprep.subr.bf16.mxu0 0
    %341 = vmatpush1.bf16.msra.mxu0 0
    %342 = vmatprep.subr.bf16.mxu0 0
    %343 = vmatpush1.bf16.msra.mxu0 0
    %344 = vmatprep.subr.bf16.mxu0 0
    %345 = vmatpush1.bf16.msra.mxu0 0
    %346 = vmatprep.subr.bf16.mxu0 0
    %347 = vmatpush1.bf16.msra.mxu0 0
    %348 = vmatprep.subr.bf16.mxu0 0
    %349 = vmatpush1.bf16.msra.mxu0 0
    %350 = vmatprep.subr.bf16.mxu0 0
    %351 = vmatpush1.bf16.msra.mxu0 0
    %352 = vmatprep.subr.bf16.mxu0 0
    %353 = vmatpush1.bf16.msra.mxu0 0
    %354 = vmatprep.subr.bf16.mxu0 0
    %355 = vmatpush1.bf16.msra.mxu0 0
    %356 = vmatprep.mubr.bf16.mxu0 0
    %357 = vmatmul.mubr.bf16.gmra.mrb[0].mxu0 %v34
    %v358 = vpop.f32.mrb[0].mxu0
    %v359 = vadd.f32 %v275, %v358
    %v360 = vpop.f32.mrb[0].mxu0
    %v361 = vpop.f32.mrb[0].mxu0
    %v362 = vadd.f32 %v275, %v361
    %v363 = vpop.f32.mrb[0].mxu0
    %364 = vdwg.mxu0
    %v365 = vpack.c.bf16 %v142, %v139
    %v366 = vpack.c.bf16 %v252, %v249
    %v367 = vpack.c.bf16 %v362, %v359
    %v368 = vlaneseq
    %v369 = vshrl.u32 %v368, 7
    %v370 = vadd.s32 %v369, 8
    %vm371 = vcmp.lt.s32.totalorder %v369, 0
    %v372 = vsub.s32 0, %v369
    %v373 = vsel %vm371, %v372, %v369
    %v374 = vshrl.u32 %v373, 1
    %v375 = vand.u32 %v373, 1
    %v376 = vsub.s32 0, %v375
    %v377 = vsel %vm371, %v376, %v375
    %vm378 = vcmp.lt.s32.totalorder %v370, 0
    %v379 = vsub.s32 0, %v370
    %v380 = vsel %vm378, %v379, %v370
    %v381 = vshrl.u32 %v380, 1
    %v382 = vand.u32 %v380, 1
    %v383 = vsub.s32 0, %v382
    %v384 = vsel %vm378, %v383, %v382
    %vm385 = vcmp.ne.s32.totalorder %v377, 0
    %vm386 = vcmp.ne.s32.totalorder %v384, 0
    %vm387 = vcmp.lt.s32.totalorder %v377, 0
    %vm388 = vcmp.lt.s32.totalorder %v384, 0
    %vm389 = vmand %vm387, %vm385
    %vm390 = vmand %vm388, %vm386
    %v391 = vadd.s32 %v377, 2
    %v392 = vadd.s32 %v384, 2
    %v393 = vsel %vm389, %v391, %v377
    %v394 = vsel %vm390, %v392, %v384
    %vm395 = vcmp.lt.s32.totalorder %v30, 0
    %v396 = vsub.s32 0, %v30
    %v397 = vsel %vm395, %v396, %v30
    %v398 = vshrl.u32 %v397, 1
    %v399 = vand.u32 %v397, 1
    %v400 = vsub.s32 0, %v399
    %v401 = vsel %vm395, %v400, %v399
    %vm402 = vcmp.ne.s32.totalorder %v401, 0
    %vm403 = vcmp.lt.s32.totalorder %v401, 0
    %vm404 = vmand %vm403, %vm402
    %v405 = vadd.s32 %v401, 2
    %v406 = vsel %vm404, %v405, %v401
    %vm407 = vcmp.eq.s32.totalorder %v393, %v406
    %vm408 = vcmp.eq.s32.totalorder %v394, %v406
    %v409 = vsel %vm407, 0.0, -1e+30
    %v410 = vsel %vm408, 0.0, -1e+30
    %vm411 = vcmask 64512
    %v413 = vsel %vm411, %v365, 0
    %v416 = vsel %vm411, %v366, 0
    %418 = vmatprep.subr.bf16.mxu0 0
    %419 = vmatpush1.bf16.xpose.msra.mxu0 %v416
    %420 = vmatprep.subr.bf16.mxu0 0
    %421 = vmatpush1.bf16.xpose.msra.mxu0 0
    %422 = vmatprep.subr.bf16.mxu0 0
    %423 = vmatpush1.bf16.xpose.msra.mxu0 0
    %424 = vmatprep.subr.bf16.mxu0 0
    %425 = vmatpush1.bf16.xpose.msra.mxu0 0
    %426 = vmatprep.subr.bf16.mxu0 0
    %427 = vmatpush1.bf16.xpose.msra.mxu0 0
    %428 = vmatprep.subr.bf16.mxu0 0
    %429 = vmatpush1.bf16.xpose.msra.mxu0 0
    %430 = vmatprep.subr.bf16.mxu0 0
    %431 = vmatpush1.bf16.xpose.msra.mxu0 0
    %432 = vmatprep.subr.bf16.mxu0 0
    %433 = vmatpush1.bf16.xpose.msra.mxu0 0
    %434 = vmatprep.subr.bf16.mxu0 0
    %435 = vmatpush1.bf16.xpose.msra.mxu0 0
    %436 = vmatprep.subr.bf16.mxu0 0
    %437 = vmatpush1.bf16.xpose.msra.mxu0 0
    %438 = vmatprep.subr.bf16.mxu0 0
    %439 = vmatpush1.bf16.xpose.msra.mxu0 0
    %440 = vmatprep.subr.bf16.mxu0 0
    %441 = vmatpush1.bf16.xpose.msra.mxu0 0
    %442 = vmatprep.subr.bf16.mxu0 0
    %443 = vmatpush1.bf16.xpose.msra.mxu0 0
    %444 = vmatprep.subr.bf16.mxu0 0
    %445 = vmatpush1.bf16.xpose.msra.mxu0 0
    %446 = vmatprep.subr.bf16.mxu0 0
    %447 = vmatpush1.bf16.xpose.msra.mxu0 0
    %448 = vmatprep.subr.bf16.mxu0 0
    %449 = vmatpush1.bf16.xpose.msra.mxu0 0
    %450 = vmatprep.mubr.bf16.mxu0 0
    %451 = vmatmul.mubr.bf16.gmra.mrb[0].mxu0 %v413
    %v452 = vpop.f32.mrb[0].mxu0
    %v453 = vadd.f32 %v409, %v452
    %v454 = vpop.f32.mrb[0].mxu0
    %v455 = vpop.f32.mrb[0].mxu0
    %v456 = vadd.f32 %v410, %v455
    %v457 = vpop.f32.mrb[0].mxu0
    %458 = vdwg.mxu0
    %vm459 = vcmask 130048
    %v460 = vsel %vm459, %v453, -inf
    %461 = vmax.xlane.f32.xlu0 %v460
    %v462 = vpop.xlane.xlu0 %461
    %v463 = vsel %vm459, %v456, -inf
    %464 = vmax.xlane.f32.xlu0 %v463
    %v465 = vpop.xlane.xlu0 %464
    %v466 = vsub.f32 %v453, %v462
    %v467 = vsub.f32 %v456, %v465
    %v468 = vmul.f32 %v466, 1.442695
    %v469 = vpow.pop %v468
    %v470 = vmul.f32 %v467, 1.442695
    %v471 = vpow.pop %v470
    %v472 = vsel %vm459, %v469, 0.0
    %473 = vadd.xlane.f32.xlu0 %v472
    %v474 = vpop.xlane.xlu0 %473
    %v475 = vsel %vm459, %v471, 0.0
    %476 = vadd.xlane.f32.xlu0 %v475
    %v477 = vpop.xlane.xlu0 %476
    %v478 = vrcp.pop %v474
    %v479 = vrcp.pop %v477
    %v480 = vmul.f32 %v469, %v478
    %v481 = vmul.f32 %v471, %v479
    %v482 = vpack.c.bf16 %v481, %v480
    %v484 = vsel %vm459, %v482, 0
    %486 = vmatprep.subr.bf16.mxu0 0
    %487 = vmatpush1.bf16.msra.mxu0 %v367
    %488 = vmatprep.subr.bf16.mxu0 0
    %489 = vmatpush1.bf16.msra.mxu0 0
    %490 = vmatprep.subr.bf16.mxu0 0
    %491 = vmatpush1.bf16.msra.mxu0 0
    %492 = vmatprep.subr.bf16.mxu0 0
    %493 = vmatpush1.bf16.msra.mxu0 0
    %494 = vmatprep.subr.bf16.mxu0 0
    %495 = vmatpush1.bf16.msra.mxu0 0
    %496 = vmatprep.subr.bf16.mxu0 0
    %497 = vmatpush1.bf16.msra.mxu0 0
    %498 = vmatprep.subr.bf16.mxu0 0
    %499 = vmatpush1.bf16.msra.mxu0 0
    %500 = vmatprep.subr.bf16.mxu0 0
    %501 = vmatpush1.bf16.msra.mxu0 0
    %502 = vmatprep.subr.bf16.mxu0 0
    %503 = vmatpush1.bf16.msra.mxu0 0
    %504 = vmatprep.subr.bf16.mxu0 0
    %505 = vmatpush1.bf16.msra.mxu0 0
    %506 = vmatprep.subr.bf16.mxu0 0
    %507 = vmatpush1.bf16.msra.mxu0 0
    %508 = vmatprep.subr.bf16.mxu0 0
    %509 = vmatpush1.bf16.msra.mxu0 0
    %510 = vmatprep.subr.bf16.mxu0 0
    %511 = vmatpush1.bf16.msra.mxu0 0
    %512 = vmatprep.subr.bf16.mxu0 0
    %513 = vmatpush1.bf16.msra.mxu0 0
    %514 = vmatprep.subr.bf16.mxu0 0
    %515 = vmatpush1.bf16.msra.mxu0 0
    %516 = vmatprep.subr.bf16.mxu0 0
    %517 = vmatpush1.bf16.msra.mxu0 0
    %518 = vmatprep.mubr.bf16.mxu0 0
    %519 = vmatmul.mubr.bf16.gmra.mrb[0].mxu0 %v484
    %v520 = vpop.f32.mrb[0].mxu0
    %v521 = vadd.f32 0.0, %v520
    %v522 = vpop.f32.mrb[0].mxu0
    %v523 = vpop.f32.mrb[0].mxu0
    %v524 = vadd.f32 0.0, %v523
    %v525 = vpop.f32.mrb[0].mxu0
    %526 = vdwg.mxu0
    %528 = vrot.lane.b32.xlu0 %v365, 120
    %v529 = vpop.permute.xlu0 %528
    %531 = vrot.lane.b32.xlu0 %v366, 120
    %v532 = vpop.permute.xlu0 %531
    %v534 = vsel %vm411, %v529, 0
    %v537 = vsel %vm411, %v532, 0
    %539 = vmatprep.subr.bf16.mxu0 0
    %540 = vmatpush1.bf16.xpose.msra.mxu0 %v537
    %541 = vmatprep.subr.bf16.mxu0 0
    %542 = vmatpush1.bf16.xpose.msra.mxu0 0
    %543 = vmatprep.subr.bf16.mxu0 0
    %544 = vmatpush1.bf16.xpose.msra.mxu0 0
    %545 = vmatprep.subr.bf16.mxu0 0
    %546 = vmatpush1.bf16.xpose.msra.mxu0 0
    %547 = vmatprep.subr.bf16.mxu0 0
    %548 = vmatpush1.bf16.xpose.msra.mxu0 0
    %549 = vmatprep.subr.bf16.mxu0 0
    %550 = vmatpush1.bf16.xpose.msra.mxu0 0
    %551 = vmatprep.subr.bf16.mxu0 0
    %552 = vmatpush1.bf16.xpose.msra.mxu0 0
    %553 = vmatprep.subr.bf16.mxu0 0
    %554 = vmatpush1.bf16.xpose.msra.mxu0 0
    %555 = vmatprep.subr.bf16.mxu0 0
    %556 = vmatpush1.bf16.xpose.msra.mxu0 0
    %557 = vmatprep.subr.bf16.mxu0 0
    %558 = vmatpush1.bf16.xpose.msra.mxu0 0
    %559 = vmatprep.subr.bf16.mxu0 0
    %560 = vmatpush1.bf16.xpose.msra.mxu0 0
    %561 = vmatprep.subr.bf16.mxu0 0
    %562 = vmatpush1.bf16.xpose.msra.mxu0 0
    %563 = vmatprep.subr.bf16.mxu0 0
    %564 = vmatpush1.bf16.xpose.msra.mxu0 0
    %565 = vmatprep.subr.bf16.mxu0 0
    %566 = vmatpush1.bf16.xpose.msra.mxu0 0
    %567 = vmatprep.subr.bf16.mxu0 0
    %568 = vmatpush1.bf16.xpose.msra.mxu0 0
    %569 = vmatprep.subr.bf16.mxu0 0
    %570 = vmatpush1.bf16.xpose.msra.mxu0 0
    %571 = vmatprep.mubr.bf16.mxu0 0
    %572 = vmatmul.mubr.bf16.gmra.mrb[0].mxu0 %v534
    %v573 = vpop.f32.mrb[0].mxu0
    %v574 = vadd.f32 %v409, %v573
    %v575 = vpop.f32.mrb[0].mxu0
    %v576 = vpop.f32.mrb[0].mxu0
    %v577 = vadd.f32 %v410, %v576
    %v578 = vpop.f32.mrb[0].mxu0
    %579 = vdwg.mxu0
    %v580 = vsel %vm459, %v574, -inf
    %581 = vmax.xlane.f32.xlu0 %v580
    %v582 = vpop.xlane.xlu0 %581
    %v583 = vsel %vm459, %v577, -inf
    %584 = vmax.xlane.f32.xlu0 %v583
    %v585 = vpop.xlane.xlu0 %584
    %v586 = vsub.f32 %v574, %v582
    %v587 = vsub.f32 %v577, %v585
    %v588 = vmul.f32 %v586, 1.442695
    %v589 = vpow.pop %v588
    %v590 = vmul.f32 %v587, 1.442695
    %v591 = vpow.pop %v590
    %v592 = vsel %vm459, %v589, 0.0
    %593 = vadd.xlane.f32.xlu0 %v592
    %v594 = vpop.xlane.xlu0 %593
    %v595 = vsel %vm459, %v591, 0.0
    %596 = vadd.xlane.f32.xlu0 %v595
    %v597 = vpop.xlane.xlu0 %596
    %v598 = vrcp.pop %v594
    %v599 = vrcp.pop %v597
    %v600 = vmul.f32 %v589, %v598
    %v601 = vmul.f32 %v591, %v599
    %v602 = vpack.c.bf16 %v601, %v600
    %604 = vrot.lane.b32.xlu0 %v367, 120
    %v605 = vpop.permute.xlu0 %604
    %v608 = vsel %vm459, %v602, 0
    %610 = vmatprep.subr.bf16.mxu0 0
    %611 = vmatpush1.bf16.msra.mxu0 %v605
    %612 = vmatprep.subr.bf16.mxu0 0
    %613 = vmatpush1.bf16.msra.mxu0 0
    %614 = vmatprep.subr.bf16.mxu0 0
    %615 = vmatpush1.bf16.msra.mxu0 0
    %616 = vmatprep.subr.bf16.mxu0 0
    %617 = vmatpush1.bf16.msra.mxu0 0
    %618 = vmatprep.subr.bf16.mxu0 0
    %619 = vmatpush1.bf16.msra.mxu0 0
    %620 = vmatprep.subr.bf16.mxu0 0
    %621 = vmatpush1.bf16.msra.mxu0 0
    %622 = vmatprep.subr.bf16.mxu0 0
    %623 = vmatpush1.bf16.msra.mxu0 0
    %624 = vmatprep.subr.bf16.mxu0 0
    %625 = vmatpush1.bf16.msra.mxu0 0
    %626 = vmatprep.subr.bf16.mxu0 0
    %627 = vmatpush1.bf16.msra.mxu0 0
    %628 = vmatprep.subr.bf16.mxu0 0
    %629 = vmatpush1.bf16.msra.mxu0 0
    %630 = vmatprep.subr.bf16.mxu0 0
    %631 = vmatpush1.bf16.msra.mxu0 0
    %632 = vmatprep.subr.bf16.mxu0 0
    %633 = vmatpush1.bf16.msra.mxu0 0
    %634 = vmatprep.subr.bf16.mxu0 0
    %635 = vmatpush1.bf16.msra.mxu0 0
    %636 = vmatprep.subr.bf16.mxu0 0
    %637 = vmatpush1.bf16.msra.mxu0 0
    %638 = vmatprep.subr.bf16.mxu0 0
    %639 = vmatpush1.bf16.msra.mxu0 0
    %640 = vmatprep.subr.bf16.mxu0 0
    %641 = vmatpush1.bf16.msra.mxu0 0
    %642 = vmatprep.mubr.bf16.mxu0 0
    %643 = vmatmul.mubr.bf16.gmra.mrb[0].mxu0 %v608
    %v644 = vpop.f32.mrb[0].mxu0
    %v645 = vadd.f32 0.0, %v644
    %v646 = vpop.f32.mrb[0].mxu0
    %v647 = vpop.f32.mrb[0].mxu0
    %v648 = vadd.f32 0.0, %v647
    %v649 = vpop.f32.mrb[0].mxu0
    %650 = vdwg.mxu0
    %651 = vrot.lane.b32.xlu0 %v365, 112
    %v652 = vpop.permute.xlu0 %651
    %653 = vrot.lane.b32.xlu0 %v366, 112
    %v654 = vpop.permute.xlu0 %653
    %v656 = vsel %vm411, %v652, 0
    %v659 = vsel %vm411, %v654, 0
    %661 = vmatprep.subr.bf16.mxu0 0
    %662 = vmatpush1.bf16.xpose.msra.mxu0 %v659
    %663 = vmatprep.subr.bf16.mxu0 0
    %664 = vmatpush1.bf16.xpose.msra.mxu0 0
    %665 = vmatprep.subr.bf16.mxu0 0
    %666 = vmatpush1.bf16.xpose.msra.mxu0 0
    %667 = vmatprep.subr.bf16.mxu0 0
    %668 = vmatpush1.bf16.xpose.msra.mxu0 0
    %669 = vmatprep.subr.bf16.mxu0 0
    %670 = vmatpush1.bf16.xpose.msra.mxu0 0
    %671 = vmatprep.subr.bf16.mxu0 0
    %672 = vmatpush1.bf16.xpose.msra.mxu0 0
    %673 = vmatprep.subr.bf16.mxu0 0
    %674 = vmatpush1.bf16.xpose.msra.mxu0 0
    %675 = vmatprep.subr.bf16.mxu0 0
    %676 = vmatpush1.bf16.xpose.msra.mxu0 0
    %677 = vmatprep.subr.bf16.mxu0 0
    %678 = vmatpush1.bf16.xpose.msra.mxu0 0
    %679 = vmatprep.subr.bf16.mxu0 0
    %680 = vmatpush1.bf16.xpose.msra.mxu0 0
    %681 = vmatprep.subr.bf16.mxu0 0
    %682 = vmatpush1.bf16.xpose.msra.mxu0 0
    %683 = vmatprep.subr.bf16.mxu0 0
    %684 = vmatpush1.bf16.xpose.msra.mxu0 0
    %685 = vmatprep.subr.bf16.mxu0 0
    %686 = vmatpush1.bf16.xpose.msra.mxu0 0
    %687 = vmatprep.subr.bf16.mxu0 0
    %688 = vmatpush1.bf16.xpose.msra.mxu0 0
    %689 = vmatprep.subr.bf16.mxu0 0
    %690 = vmatpush1.bf16.xpose.msra.mxu0 0
    %691 = vmatprep.subr.bf16.mxu0 0
    %692 = vmatpush1.bf16.xpose.msra.mxu0 0
    %693 = vmatprep.mubr.bf16.mxu0 0
    %694 = vmatmul.mubr.bf16.gmra.mrb[0].mxu0 %v656
    %v695 = vpop.f32.mrb[0].mxu0
    %v696 = vadd.f32 %v409, %v695
    %v697 = vpop.f32.mrb[0].mxu0
    %v698 = vpop.f32.mrb[0].mxu0
    %v699 = vadd.f32 %v410, %v698
    %v700 = vpop.f32.mrb[0].mxu0
    %701 = vdwg.mxu0
    %v702 = vsel %vm459, %v696, -inf
    %703 = vmax.xlane.f32.xlu0 %v702
    %v704 = vpop.xlane.xlu0 %703
    %v705 = vsel %vm459, %v699, -inf
    %706 = vmax.xlane.f32.xlu0 %v705
    %v707 = vpop.xlane.xlu0 %706
    %v708 = vsub.f32 %v696, %v704
    %v709 = vsub.f32 %v699, %v707
    %v710 = vmul.f32 %v708, 1.442695
    %v711 = vpow.pop %v710
    %v712 = vmul.f32 %v709, 1.442695
    %v713 = vpow.pop %v712
    %v714 = vsel %vm459, %v711, 0.0
    %715 = vadd.xlane.f32.xlu0 %v714
    %v716 = vpop.xlane.xlu0 %715
    %v717 = vsel %vm459, %v713, 0.0
    %718 = vadd.xlane.f32.xlu0 %v717
    %v719 = vpop.xlane.xlu0 %718
    %v720 = vrcp.pop %v716
    %v721 = vrcp.pop %v719
    %v722 = vmul.f32 %v711, %v720
    %v723 = vmul.f32 %v713, %v721
    %v724 = vpack.c.bf16 %v723, %v722
    %725 = vrot.lane.b32.xlu0 %v367, 112
    %v726 = vpop.permute.xlu0 %725
    %v729 = vsel %vm459, %v724, 0
    %731 = vmatprep.subr.bf16.mxu0 0
    %732 = vmatpush1.bf16.msra.mxu0 %v726
    %733 = vmatprep.subr.bf16.mxu0 0
    %734 = vmatpush1.bf16.msra.mxu0 0
    %735 = vmatprep.subr.bf16.mxu0 0
    %736 = vmatpush1.bf16.msra.mxu0 0
    %737 = vmatprep.subr.bf16.mxu0 0
    %738 = vmatpush1.bf16.msra.mxu0 0
    %739 = vmatprep.subr.bf16.mxu0 0
    %740 = vmatpush1.bf16.msra.mxu0 0
    %741 = vmatprep.subr.bf16.mxu0 0
    %742 = vmatpush1.bf16.msra.mxu0 0
    %743 = vmatprep.subr.bf16.mxu0 0
    %744 = vmatpush1.bf16.msra.mxu0 0
    %745 = vmatprep.subr.bf16.mxu0 0
    %746 = vmatpush1.bf16.msra.mxu0 0
    %747 = vmatprep.subr.bf16.mxu0 0
    %748 = vmatpush1.bf16.msra.mxu0 0
    %749 = vmatprep.subr.bf16.mxu0 0
    %750 = vmatpush1.bf16.msra.mxu0 0
    %751 = vmatprep.subr.bf16.mxu0 0
    %752 = vmatpush1.bf16.msra.mxu0 0
    %753 = vmatprep.subr.bf16.mxu0 0
    %754 = vmatpush1.bf16.msra.mxu0 0
    %755 = vmatprep.subr.bf16.mxu0 0
    %756 = vmatpush1.bf16.msra.mxu0 0
    %757 = vmatprep.subr.bf16.mxu0 0
    %758 = vmatpush1.bf16.msra.mxu0 0
    %759 = vmatprep.subr.bf16.mxu0 0
    %760 = vmatpush1.bf16.msra.mxu0 0
    %761 = vmatprep.subr.bf16.mxu0 0
    %762 = vmatpush1.bf16.msra.mxu0 0
    %763 = vmatprep.mubr.bf16.mxu0 0
    %764 = vmatmul.mubr.bf16.gmra.mrb[0].mxu0 %v729
    %v765 = vpop.f32.mrb[0].mxu0
    %v766 = vadd.f32 0.0, %v765
    %v767 = vpop.f32.mrb[0].mxu0
    %v768 = vpop.f32.mrb[0].mxu0
    %v769 = vadd.f32 0.0, %v768
    %v770 = vpop.f32.mrb[0].mxu0
    %771 = vdwg.mxu0
    %772 = vrot.lane.b32.xlu0 %v365, 104
    %v773 = vpop.permute.xlu0 %772
    %774 = vrot.lane.b32.xlu0 %v366, 104
    %v775 = vpop.permute.xlu0 %774
    %v777 = vsel %vm411, %v773, 0
    %v780 = vsel %vm411, %v775, 0
    %782 = vmatprep.subr.bf16.mxu0 0
    %783 = vmatpush1.bf16.xpose.msra.mxu0 %v780
    %784 = vmatprep.subr.bf16.mxu0 0
    %785 = vmatpush1.bf16.xpose.msra.mxu0 0
    %786 = vmatprep.subr.bf16.mxu0 0
    %787 = vmatpush1.bf16.xpose.msra.mxu0 0
    %788 = vmatprep.subr.bf16.mxu0 0
    %789 = vmatpush1.bf16.xpose.msra.mxu0 0
    %790 = vmatprep.subr.bf16.mxu0 0
    %791 = vmatpush1.bf16.xpose.msra.mxu0 0
    %792 = vmatprep.subr.bf16.mxu0 0
    %793 = vmatpush1.bf16.xpose.msra.mxu0 0
    %794 = vmatprep.subr.bf16.mxu0 0
    %795 = vmatpush1.bf16.xpose.msra.mxu0 0
    %796 = vmatprep.subr.bf16.mxu0 0
    %797 = vmatpush1.bf16.xpose.msra.mxu0 0
    %798 = vmatprep.subr.bf16.mxu0 0
    %799 = vmatpush1.bf16.xpose.msra.mxu0 0
    %800 = vmatprep.subr.bf16.mxu0 0
    %801 = vmatpush1.bf16.xpose.msra.mxu0 0
    %802 = vmatprep.subr.bf16.mxu0 0
    %803 = vmatpush1.bf16.xpose.msra.mxu0 0
    %804 = vmatprep.subr.bf16.mxu0 0
    %805 = vmatpush1.bf16.xpose.msra.mxu0 0
    %806 = vmatprep.subr.bf16.mxu0 0
    %807 = vmatpush1.bf16.xpose.msra.mxu0 0
    %808 = vmatprep.subr.bf16.mxu0 0
    %809 = vmatpush1.bf16.xpose.msra.mxu0 0
    %810 = vmatprep.subr.bf16.mxu0 0
    %811 = vmatpush1.bf16.xpose.msra.mxu0 0
    %812 = vmatprep.subr.bf16.mxu0 0
    %813 = vmatpush1.bf16.xpose.msra.mxu0 0
    %814 = vmatprep.mubr.bf16.mxu0 0
    %815 = vmatmul.mubr.bf16.gmra.mrb[0].mxu0 %v777
    %v816 = vpop.f32.mrb[0].mxu0
    %v817 = vadd.f32 %v409, %v816
    %v818 = vpop.f32.mrb[0].mxu0
    %v819 = vpop.f32.mrb[0].mxu0
    %v820 = vadd.f32 %v410, %v819
    %v821 = vpop.f32.mrb[0].mxu0
    %822 = vdwg.mxu0
    %v823 = vsel %vm459, %v817, -inf
    %824 = vmax.xlane.f32.xlu0 %v823
    %v825 = vpop.xlane.xlu0 %824
    %v826 = vsel %vm459, %v820, -inf
    %827 = vmax.xlane.f32.xlu0 %v826
    %v828 = vpop.xlane.xlu0 %827
    %v829 = vsub.f32 %v817, %v825
    %v830 = vsub.f32 %v820, %v828
    %v831 = vmul.f32 %v829, 1.442695
    %v832 = vpow.pop %v831
    %v833 = vmul.f32 %v830, 1.442695
    %v834 = vpow.pop %v833
    %v835 = vsel %vm459, %v832, 0.0
    %836 = vadd.xlane.f32.xlu0 %v835
    %v837 = vpop.xlane.xlu0 %836
    %v838 = vsel %vm459, %v834, 0.0
    %839 = vadd.xlane.f32.xlu0 %v838
    %v840 = vpop.xlane.xlu0 %839
    %v841 = vrcp.pop %v837
    %v842 = vrcp.pop %v840
    %v843 = vmul.f32 %v832, %v841
    %v844 = vmul.f32 %v834, %v842
    %v845 = vpack.c.bf16 %v844, %v843
    %846 = vrot.lane.b32.xlu0 %v367, 104
    %v847 = vpop.permute.xlu0 %846
    %v850 = vsel %vm459, %v845, 0
    %852 = vmatprep.subr.bf16.mxu0 0
    %853 = vmatpush1.bf16.msra.mxu0 %v847
    %854 = vmatprep.subr.bf16.mxu0 0
    %855 = vmatpush1.bf16.msra.mxu0 0
    %856 = vmatprep.subr.bf16.mxu0 0
    %857 = vmatpush1.bf16.msra.mxu0 0
    %858 = vmatprep.subr.bf16.mxu0 0
    %859 = vmatpush1.bf16.msra.mxu0 0
    %860 = vmatprep.subr.bf16.mxu0 0
    %861 = vmatpush1.bf16.msra.mxu0 0
    %862 = vmatprep.subr.bf16.mxu0 0
    %863 = vmatpush1.bf16.msra.mxu0 0
    %864 = vmatprep.subr.bf16.mxu0 0
    %865 = vmatpush1.bf16.msra.mxu0 0
    %866 = vmatprep.subr.bf16.mxu0 0
    %867 = vmatpush1.bf16.msra.mxu0 0
    %868 = vmatprep.subr.bf16.mxu0 0
    %869 = vmatpush1.bf16.msra.mxu0 0
    %870 = vmatprep.subr.bf16.mxu0 0
    %871 = vmatpush1.bf16.msra.mxu0 0
    %872 = vmatprep.subr.bf16.mxu0 0
    %873 = vmatpush1.bf16.msra.mxu0 0
    %874 = vmatprep.subr.bf16.mxu0 0
    %875 = vmatpush1.bf16.msra.mxu0 0
    %876 = vmatprep.subr.bf16.mxu0 0
    %877 = vmatpush1.bf16.msra.mxu0 0
    %878 = vmatprep.subr.bf16.mxu0 0
    %879 = vmatpush1.bf16.msra.mxu0 0
    %880 = vmatprep.subr.bf16.mxu0 0
    %881 = vmatpush1.bf16.msra.mxu0 0
    %882 = vmatprep.subr.bf16.mxu0 0
    %883 = vmatpush1.bf16.msra.mxu0 0
    %884 = vmatprep.mubr.bf16.mxu0 0
    %885 = vmatmul.mubr.bf16.gmra.mrb[0].mxu0 %v850
    %v886 = vpop.f32.mrb[0].mxu0
    %v887 = vadd.f32 0.0, %v886
    %v888 = vpop.f32.mrb[0].mxu0
    %v889 = vpop.f32.mrb[0].mxu0
    %v890 = vadd.f32 0.0, %v889
    %v891 = vpop.f32.mrb[0].mxu0
    %892 = vdwg.mxu0
    %895 = vrot.lane.b32.xlu0 %v645, 8
    %v896 = vpop.permute.xlu0 %895
    %897 = vrot.lane.b32.xlu0 %v648, 8
    %v898 = vpop.permute.xlu0 %897
    %903 = vrot.lane.b32.xlu0 %v766, 16
    %v904 = vpop.permute.xlu0 %903
    %905 = vrot.lane.b32.xlu0 %v769, 16
    %v906 = vpop.permute.xlu0 %905
    %911 = vrot.lane.b32.xlu0 %v887, 24
    %v912 = vpop.permute.xlu0 %911
    %913 = vrot.lane.b32.xlu0 %v890, 24
    %v914 = vpop.permute.xlu0 %913
    %v917 = vsel %vm411, %v521, %v896
    %v918 = vsel %vm411, %v524, %v898
    %v919 = vsel %vm459, %v917, %v904
    %v920 = vsel %vm459, %v918, %v906
    %vm921 = vcmask 195584
    %v922 = vsel %vm921, %v919, %v912
    %v923 = vsel %vm921, %v920, %v914
    %vm924 = vcmask 261120
    %v925 = vsel %vm924, %v922, 0.0
    %v926 = vsel %vm924, %v923, 0.0
    %v927 = vpack.c.bf16 %v926, %v925
    %v928 = vld [vmem:[#allocation2 + $0xc0] sm:$0xf]
    %v929 = vld [vmem:[#allocation2 + $0xc4] sm:$0xf]
    %v930 = vld [vmem:[#allocation2 + $0xc8] sm:$0xf]
    %v931 = vld [vmem:[#allocation2 + $0xcc] sm:$0xf]
    %v932 = vld [vmem:[#allocation2 + $0xd0] sm:$0xf]
    %v933 = vld [vmem:[#allocation2 + $0xd4] sm:$0xf]
    %v934 = vld [vmem:[#allocation2 + $0xd8] sm:$0xf]
    %v935 = vld [vmem:[#allocation2 + $0xdc] sm:$0xf]
    %v936 = vld [vmem:[#allocation2 + $0xe0] sm:$0xf]
    %v937 = vld [vmem:[#allocation2 + $0xe4] sm:$0xf]
    %v938 = vld [vmem:[#allocation2 + $0xe8] sm:$0xf]
    %v939 = vld [vmem:[#allocation2 + $0xec] sm:$0xf]
    %v940 = vld [vmem:[#allocation2 + $0xf0] sm:$0xf]
    %v941 = vld [vmem:[#allocation2 + $0xf4] sm:$0xf]
    %v942 = vld [vmem:[#allocation2 + $0xf8] sm:$0xf]
    %v943 = vld [vmem:[#allocation2 + $0xfc] sm:$0xf]
    %v944 = vld [vmem:[%s2 + $0x3] sm:$0x1]
    %v945 = vlaneseq
    %v946 = vshrl.u32 %v945, 7
    %v947 = vsub.s32 0, %v946
    %v948 = vrot.slane %v944, %v947
    %v965 = vunpack.c.l.b16 %v928
    %v966 = vunpack.c.l.b16 %v929
    %v967 = vunpack.c.l.b16 %v930
    %v968 = vunpack.c.l.b16 %v931
    %v969 = vunpack.c.l.b16 %v932
    %v970 = vunpack.c.l.b16 %v933
    %v971 = vunpack.c.l.b16 %v934
    %v972 = vunpack.c.l.b16 %v935
    %v973 = vunpack.c.l.b16 %v936
    %v974 = vunpack.c.l.b16 %v937
    %v975 = vunpack.c.l.b16 %v938
    %v976 = vunpack.c.l.b16 %v939
    %v977 = vunpack.c.l.b16 %v940
    %v978 = vunpack.c.l.b16 %v941
    %v979 = vunpack.c.l.b16 %v942
    %v980 = vunpack.c.l.b16 %v943
    %v981 = vpack.c.b16 %v966, %v965
    %v982 = vpack.c.b16 %v968, %v967
    %v983 = vpack.c.b16 %v970, %v969
    %v984 = vpack.c.b16 %v972, %v971
    %v985 = vpack.c.b16 %v974, %v973
    %v986 = vpack.c.b16 %v976, %v975
    %v987 = vpack.c.b16 %v978, %v977
    %v988 = vpack.c.b16 %v980, %v979
    %997 = vmatprep.subr.bf16.mxu0 0
    %998 = vmatpush1.bf16.msra.mxu0 %v981
    %999 = vmatprep.subr.bf16.mxu0 0
    %1000 = vmatpush1.bf16.msra.mxu0 %v982
    %1001 = vmatprep.subr.bf16.mxu0 0
    %1002 = vmatpush1.bf16.msra.mxu0 %v983
    %1003 = vmatprep.subr.bf16.mxu0 0
    %1004 = vmatpush1.bf16.msra.mxu0 %v984
    %1005 = vmatprep.subr.bf16.mxu0 0
    %1006 = vmatpush1.bf16.msra.mxu0 %v985
    %1007 = vmatprep.subr.bf16.mxu0 0
    %1008 = vmatpush1.bf16.msra.mxu0 %v986
    %1009 = vmatprep.subr.bf16.mxu0 0
    %1010 = vmatpush1.bf16.msra.mxu0 %v987
    %1011 = vmatprep.subr.bf16.mxu0 0
    %1012 = vmatpush1.bf16.msra.mxu0 %v988
    %1013 = vmatprep.subr.bf16.mxu0 0
    %1014 = vmatpush1.bf16.msra.mxu0 0
    %1015 = vmatprep.subr.bf16.mxu0 0
    %1016 = vmatpush1.bf16.msra.mxu0 0
    %1017 = vmatprep.subr.bf16.mxu0 0
    %1018 = vmatpush1.bf16.msra.mxu0 0
    %1019 = vmatprep.subr.bf16.mxu0 0
    %1020 = vmatpush1.bf16.msra.mxu0 0
    %1021 = vmatprep.subr.bf16.mxu0 0
    %1022 = vmatpush1.bf16.msra.mxu0 0
    %1023 = vmatprep.subr.bf16.mxu0 0
    %1024 = vmatpush1.bf16.msra.mxu0 0
    %1025 = vmatprep.subr.bf16.mxu0 0
    %1026 = vmatpush1.bf16.msra.mxu0 0
    %1027 = vmatprep.subr.bf16.mxu0 0
    %1028 = vmatpush1.bf16.msra.mxu0 0
    %1029 = vmatprep.mubr.bf16.mxu0 0
    %1030 = vmatmul.mubr.bf16.gmra.mrb[0].mxu0 %v927
    %v1031 = vpop.f32.mrb[0].mxu0
    %v1032 = vadd.f32 %v948, %v1031
    %v1033 = vpop.f32.mrb[0].mxu0
    %v1034 = vpop.f32.mrb[0].mxu0
    %v1035 = vadd.f32 %v948, %v1034
    %v1036 = vpop.f32.mrb[0].mxu0
    %1037 = vdwg.mxu0
    %v1038 = vadd.f32 %v32, %v1032
    %v1039 = vadd.f32 %v33, %v1035
    %1040 = vadd.xlane.f32.xlu0 %v1038
    %v1041 = vpop.xlane.xlu0 %1040
    %1042 = vadd.xlane.f32.xlu0 %v1039
    %v1043 = vpop.xlane.xlu0 %1042
    %v1044 = vmul.f32 %v1041, 0.03125
    %v1045 = vmul.f32 %v1043, 0.03125
    %v1046 = vsub.f32 %v1038, %v1044
    %v1047 = vsub.f32 %v1039, %v1045
    %v1048 = vsel %vm31, 1, 0
    %vm1049 = vcmp.eq.s32.totalorder %v1048, 1
    %v1050 = vsel %vm1049, %v1046, 0.0
    %v1051 = vsel %vm1049, %v1047, 0.0
    %v1052 = vmul.f32 %v1050, %v1050
    %v1053 = vmul.f32 %v1051, %v1051
    %1054 = vadd.xlane.f32.xlu0 %v1052
    %v1055 = vpop.xlane.xlu0 %1054
    %1056 = vadd.xlane.f32.xlu0 %v1053
    %v1057 = vpop.xlane.xlu0 %1056
    %v1058 = vmul.f32 %v1055, 0.03125
    %v1059 = vmul.f32 %v1057, 0.03125
    %v1060 = vadd.f32 %v1058, 1e-05
    %v1061 = vadd.f32 %v1059, 1e-05
    %v1062 = vrsqrt.pop %v1060
    %v1063 = vrsqrt.pop %v1061
    %v1064 = vmul.f32 %v1050, %v1062
    %v1065 = vmul.f32 %v1051, %v1063
    %v1066 = vld [vmem:[%s2 + $0x4] sm:$0x1]
    %v1067 = vlaneseq
    %v1068 = vshrl.u32 %v1067, 7
    %v1069 = vsub.s32 0, %v1068
    %v1070 = vrot.slane %v1066, %v1069
    %v1071 = vmul.f32 %v1064, %v1070
    %v1072 = vmul.f32 %v1065, %v1070
    %v1073 = vld [vmem:[%s2 + $0x5] sm:$0x1]
    %v1074 = vlaneseq
    %v1075 = vshrl.u32 %v1074, 7
    %v1076 = vsub.s32 0, %v1075
    %v1077 = vrot.slane %v1073, %v1076
    %v1078 = vadd.f32 %v1071, %v1077
    %v1079 = vadd.f32 %v1072, %v1077
    %v1080 = vpack.c.bf16 %v1079, %v1078
    %v1081 = vld [vmem:[#allocation2 + $0x100] sm:$0xf]
    %v1082 = vld [vmem:[#allocation2 + $0x104] sm:$0xf]
    %v1083 = vld [vmem:[#allocation2 + $0x108] sm:$0xf]
    %v1084 = vld [vmem:[#allocation2 + $0x10c] sm:$0xf]
    %v1085 = vld [vmem:[#allocation2 + $0x110] sm:$0xf]
    %v1086 = vld [vmem:[#allocation2 + $0x114] sm:$0xf]
    %v1087 = vld [vmem:[#allocation2 + $0x118] sm:$0xf]
    %v1088 = vld [vmem:[#allocation2 + $0x11c] sm:$0xf]
    %v1089 = vld [vmem:[#allocation2 + $0x120] sm:$0xf]
    %v1090 = vld [vmem:[#allocation2 + $0x124] sm:$0xf]
    %v1091 = vld [vmem:[#allocation2 + $0x128] sm:$0xf]
    %v1092 = vld [vmem:[#allocation2 + $0x12c] sm:$0xf]
    %v1093 = vld [vmem:[#allocation2 + $0x130] sm:$0xf]
    %v1094 = vld [vmem:[#allocation2 + $0x134] sm:$0xf]
    %v1095 = vld [vmem:[#allocation2 + $0x138] sm:$0xf]
    %v1096 = vld [vmem:[#allocation2 + $0x13c] sm:$0xf]
    %v1097 = vld [vmem:[%s2 + $0x6] sm:$0x1]
    %v1098 = vlaneseq
    %v1099 = vshrl.u32 %v1098, 7
    %v1100 = vsub.s32 0, %v1099
    %v1101 = vrot.slane %v1097, %v1100
    %v1118 = vunpack.c.l.b16 %v1081
    %v1119 = vunpack.c.l.b16 %v1082
    %v1120 = vunpack.c.l.b16 %v1083
    %v1121 = vunpack.c.l.b16 %v1084
    %v1122 = vunpack.c.l.b16 %v1085
    %v1123 = vunpack.c.l.b16 %v1086
    %v1124 = vunpack.c.l.b16 %v1087
    %v1125 = vunpack.c.l.b16 %v1088
    %v1126 = vunpack.c.l.b16 %v1089
    %v1127 = vunpack.c.l.b16 %v1090
    %v1128 = vunpack.c.l.b16 %v1091
    %v1129 = vunpack.c.l.b16 %v1092
    %v1130 = vunpack.c.l.b16 %v1093
    %v1131 = vunpack.c.l.b16 %v1094
    %v1132 = vunpack.c.l.b16 %v1095
    %v1133 = vunpack.c.l.b16 %v1096
    %v1134 = vpack.c.b16 %v1119, %v1118
    %v1135 = vpack.c.b16 %v1121, %v1120
    %v1136 = vpack.c.b16 %v1123, %v1122
    %v1137 = vpack.c.b16 %v1125, %v1124
    %v1138 = vpack.c.b16 %v1127, %v1126
    %v1139 = vpack.c.b16 %v1129, %v1128
    %v1140 = vpack.c.b16 %v1131, %v1130
    %v1141 = vpack.c.b16 %v1133, %v1132
    %1150 = vmatprep.subr.bf16.mxu0 0
    %1151 = vmatpush1.bf16.msra.mxu0 %v1134
    %1152 = vmatprep.subr.bf16.mxu0 0
    %1153 = vmatpush1.bf16.msra.mxu0 %v1135
    %1154 = vmatprep.subr.bf16.mxu0 0
    %1155 = vmatpush1.bf16.msra.mxu0 %v1136
    %1156 = vmatprep.subr.bf16.mxu0 0
    %1157 = vmatpush1.bf16.msra.mxu0 %v1137
    %1158 = vmatprep.subr.bf16.mxu0 0
    %1159 = vmatpush1.bf16.msra.mxu0 %v1138
    %1160 = vmatprep.subr.bf16.mxu0 0
    %1161 = vmatpush1.bf16.msra.mxu0 %v1139
    %1162 = vmatprep.subr.bf16.mxu0 0
    %1163 = vmatpush1.bf16.msra.mxu0 %v1140
    %1164 = vmatprep.subr.bf16.mxu0 0
    %1165 = vmatpush1.bf16.msra.mxu0 %v1141
    %1166 = vmatprep.subr.bf16.mxu0 0
    %1167 = vmatpush1.bf16.msra.mxu0 0
    %1168 = vmatprep.subr.bf16.mxu0 0
    %1169 = vmatpush1.bf16.msra.mxu0 0
    %1170 = vmatprep.subr.bf16.mxu0 0
    %1171 = vmatpush1.bf16.msra.mxu0 0
    %1172 = vmatprep.subr.bf16.mxu0 0
    %1173 = vmatpush1.bf16.msra.mxu0 0
    %1174 = vmatprep.subr.bf16.mxu0 0
    %1175 = vmatpush1.bf16.msra.mxu0 0
    %1176 = vmatprep.subr.bf16.mxu0 0
    %1177 = vmatpush1.bf16.msra.mxu0 0
    %1178 = vmatprep.subr.bf16.mxu0 0
    %1179 = vmatpush1.bf16.msra.mxu0 0
    %1180 = vmatprep.subr.bf16.mxu0 0
    %1181 = vmatpush1.bf16.msra.mxu0 0
    %1182 = vmatprep.mubr.bf16.mxu0 0
    %1183 = vmatmul.mubr.bf16.gmra.mrb[0].mxu0 %v1080
    %v1184 = vpop.f32.mrb[0].mxu0
    %v1185 = vadd.f32 %v1101, %v1184
    %v1186 = vpop.f32.mrb[0].mxu0
    %v1187 = vpop.f32.mrb[0].mxu0
    %v1188 = vadd.f32 %v1101, %v1187
    %v1189 = vpop.f32.mrb[0].mxu0
    %1190 = vdwg.mxu0
    %v1191 = vmul.f32 %v1185, 0.5
    %v1192 = vmul.f32 %v1188, 0.5
    %v1193 = vmul.f32 %v1185, 0.70710677
    %v1194 = vmul.f32 %v1188, 0.70710677
    %vm1195 = vcmp.ge.f32.partialorder %v1193, 0.0
    %vm1196 = vcmp.ge.f32.partialorder %v1194, 0.0
    %v1197 = vsel %vm1195, 1.0, -1.0
    %v1198 = vsel %vm1196, 1.0, -1.0
    %v1199 = vand.u32 2147483647, %v1193
    %v1200 = vand.u32 2147483647, %v1194
    %v1201 = vmul.f32 %v1199, 0.3275911
    %v1202 = vmul.f32 %v1200, 0.3275911
    %v1203 = vadd.f32 %v1201, 1.0
    %v1204 = vadd.f32 %v1202, 1.0
    %v1205 = vrcp.pop %v1203
    %v1206 = vmul.f32 1.0, %v1205
    %v1207 = vrcp.pop %v1204
    %v1208 = vmul.f32 1.0, %v1207
    %v1209 = vmul.f32 %v1206, 1.0614054
    %v1210 = vmul.f32 %v1208, 1.0614054
    %v1211 = vadd.f32 %v1209, -1.4531521
    %v1212 = vadd.f32 %v1210, -1.4531521
    %v1213 = vmul.f32 %v1211, %v1206
    %v1214 = vmul.f32 %v1212, %v1208
    %v1215 = vadd.f32 %v1213, 1.4214138
    %v1216 = vadd.f32 %v1214, 1.4214138
    %v1217 = vmul.f32 %v1215, %v1206
    %v1218 = vmul.f32 %v1216, %v1208
    %v1219 = vadd.f32 %v1217, -0.28449672
    %v1220 = vadd.f32 %v1218, -0.28449672
    %v1221 = vmul.f32 %v1219, %v1206
    %v1222 = vmul.f32 %v1220, %v1208
    %v1223 = vadd.f32 %v1221, 0.2548296
    %v1224 = vadd.f32 %v1222, 0.2548296
    %v1225 = vmul.f32 %v1223, %v1206
    %v1226 = vmul.f32 %v1224, %v1208
    %v1227 = vsub.f32 0.0, %v1199
    %v1228 = vsub.f32 0.0, %v1200
    %v1229 = vmul.f32 %v1227, %v1199
    %v1230 = vmul.f32 %v1228, %v1200
    %v1231 = vmul.f32 %v1229, 1.442695
    %v1232 = vpow.pop %v1231
    %v1233 = vmul.f32 %v1230, 1.442695
    %v1234 = vpow.pop %v1233
    %v1235 = vmul.f32 %v1225, %v1232
    %v1236 = vmul.f32 %v1226, %v1234
    %v1237 = vsub.f32 1.0, %v1235
    %v1238 = vsub.f32 1.0, %v1236
    %v1239 = vmul.f32 %v1197, %v1237
    %v1240 = vmul.f32 %v1198, %v1238
    %v1241 = vadd.f32 %v1239, 1.0
    %v1242 = vadd.f32 %v1240, 1.0
    %v1243 = vmul.f32 %v1191, %v1241
    %v1244 = vmul.f32 %v1192, %v1242
    %v1245 = vpack.c.bf16 %v1244, %v1243
    %v1246 = vld [vmem:[#allocation2 + $0x140] sm:$0xf]
    %v1247 = vld [vmem:[#allocation2 + $0x144] sm:$0xf]
    %v1248 = vld [vmem:[#allocation2 + $0x148] sm:$0xf]
    %v1249 = vld [vmem:[#allocation2 + $0x14c] sm:$0xf]
    %v1250 = vld [vmem:[#allocation2 + $0x150] sm:$0xf]
    %v1251 = vld [vmem:[#allocation2 + $0x154] sm:$0xf]
    %v1252 = vld [vmem:[#allocation2 + $0x158] sm:$0xf]
    %v1253 = vld [vmem:[#allocation2 + $0x15c] sm:$0xf]
    %v1254 = vld [vmem:[#allocation2 + $0x160] sm:$0xf]
    %v1255 = vld [vmem:[#allocation2 + $0x164] sm:$0xf]
    %v1256 = vld [vmem:[#allocation2 + $0x168] sm:$0xf]
    %v1257 = vld [vmem:[#allocation2 + $0x16c] sm:$0xf]
    %v1258 = vld [vmem:[#allocation2 + $0x170] sm:$0xf]
    %v1259 = vld [vmem:[#allocation2 + $0x174] sm:$0xf]
    %v1260 = vld [vmem:[#allocation2 + $0x178] sm:$0xf]
    %v1261 = vld [vmem:[#allocation2 + $0x17c] sm:$0xf]
    %v1262 = vld [vmem:[%s2 + $0x7] sm:$0x1]
    %v1263 = vlaneseq
    %v1264 = vshrl.u32 %v1263, 7
    %v1265 = vsub.s32 0, %v1264
    %v1266 = vrot.slane %v1262, %v1265
    %v1283 = vunpack.c.l.b16 %v1246
    %v1284 = vunpack.c.l.b16 %v1247
    %v1285 = vunpack.c.l.b16 %v1248
    %v1286 = vunpack.c.l.b16 %v1249
    %v1287 = vunpack.c.l.b16 %v1250
    %v1288 = vunpack.c.l.b16 %v1251
    %v1289 = vunpack.c.l.b16 %v1252
    %v1290 = vunpack.c.l.b16 %v1253
    %v1291 = vunpack.c.l.b16 %v1254
    %v1292 = vunpack.c.l.b16 %v1255
    %v1293 = vunpack.c.l.b16 %v1256
    %v1294 = vunpack.c.l.b16 %v1257
    %v1295 = vunpack.c.l.b16 %v1258
    %v1296 = vunpack.c.l.b16 %v1259
    %v1297 = vunpack.c.l.b16 %v1260
    %v1298 = vunpack.c.l.b16 %v1261
    %v1299 = vpack.c.b16 %v1284, %v1283
    %v1300 = vpack.c.b16 %v1286, %v1285
    %v1301 = vpack.c.b16 %v1288, %v1287
    %v1302 = vpack.c.b16 %v1290, %v1289
    %v1303 = vpack.c.b16 %v1292, %v1291
    %v1304 = vpack.c.b16 %v1294, %v1293
    %v1305 = vpack.c.b16 %v1296, %v1295
    %v1306 = vpack.c.b16 %v1298, %v1297
    %1315 = vmatprep.subr.bf16.mxu0 0
    %1316 = vmatpush1.bf16.msra.mxu0 %v1299
    %1317 = vmatprep.subr.bf16.mxu0 0
    %1318 = vmatpush1.bf16.msra.mxu0 %v1300
    %1319 = vmatprep.subr.bf16.mxu0 0
    %1320 = vmatpush1.bf16.msra.mxu0 %v1301
    %1321 = vmatprep.subr.bf16.mxu0 0
    %1322 = vmatpush1.bf16.msra.mxu0 %v1302
    %1323 = vmatprep.subr.bf16.mxu0 0
    %1324 = vmatpush1.bf16.msra.mxu0 %v1303
    %1325 = vmatprep.subr.bf16.mxu0 0
    %1326 = vmatpush1.bf16.msra.mxu0 %v1304
    %1327 = vmatprep.subr.bf16.mxu0 0
    %1328 = vmatpush1.bf16.msra.mxu0 %v1305
    %1329 = vmatprep.subr.bf16.mxu0 0
    %1330 = vmatpush1.bf16.msra.mxu0 %v1306
    %1331 = vmatprep.subr.bf16.mxu0 0
    %1332 = vmatpush1.bf16.msra.mxu0 0
    %1333 = vmatprep.subr.bf16.mxu0 0
    %1334 = vmatpush1.bf16.msra.mxu0 0
    %1335 = vmatprep.subr.bf16.mxu0 0
    %1336 = vmatpush1.bf16.msra.mxu0 0
    %1337 = vmatprep.subr.bf16.mxu0 0
    %1338 = vmatpush1.bf16.msra.mxu0 0
    %1339 = vmatprep.subr.bf16.mxu0 0
    %1340 = vmatpush1.bf16.msra.mxu0 0
    %1341 = vmatprep.subr.bf16.mxu0 0
    %1342 = vmatpush1.bf16.msra.mxu0 0
    %1343 = vmatprep.subr.bf16.mxu0 0
    %1344 = vmatpush1.bf16.msra.mxu0 0
    %1345 = vmatprep.subr.bf16.mxu0 0
    %1346 = vmatpush1.bf16.msra.mxu0 0
    %1347 = vmatprep.mubr.bf16.mxu0 0
    %1348 = vmatmul.mubr.bf16.gmra.mrb[0].mxu0 %v1245
    %v1349 = vpop.f32.mrb[0].mxu0
    %v1350 = vadd.f32 %v1266, %v1349
    %v1351 = vpop.f32.mrb[0].mxu0
    %v1352 = vpop.f32.mrb[0].mxu0
    %v1353 = vadd.f32 %v1266, %v1352
    %v1354 = vpop.f32.mrb[0].mxu0
    %1355 = vdwg.mxu0
    %v1356 = vadd.f32 %v1078, %v1350
    %v1357 = vadd.f32 %v1079, %v1353
    %1358 = vadd.xlane.f32.xlu0 %v1356
    %v1359 = vpop.xlane.xlu0 %1358
    %1360 = vadd.xlane.f32.xlu0 %v1357
    %v1361 = vpop.xlane.xlu0 %1360
    %v1362 = vmul.f32 %v1359, 0.03125
    %v1363 = vmul.f32 %v1361, 0.03125
    %v1364 = vsub.f32 %v1356, %v1362
    %v1365 = vsub.f32 %v1357, %v1363
    %v1366 = vsel %vm1049, %v1364, 0.0
    %v1367 = vsel %vm1049, %v1365, 0.0
    %v1368 = vmul.f32 %v1366, %v1366
    %v1369 = vmul.f32 %v1367, %v1367
    %1370 = vadd.xlane.f32.xlu0 %v1368
    %v1371 = vpop.xlane.xlu0 %1370
    %1372 = vadd.xlane.f32.xlu0 %v1369
    %v1373 = vpop.xlane.xlu0 %1372
    %v1374 = vmul.f32 %v1371, 0.03125
    %v1375 = vmul.f32 %v1373, 0.03125
    %v1376 = vadd.f32 %v1374, 1e-05
    %v1377 = vadd.f32 %v1375, 1e-05
    %v1378 = vrsqrt.pop %v1376
    %v1379 = vrsqrt.pop %v1377
    %v1380 = vmul.f32 %v1366, %v1378
    %v1381 = vmul.f32 %v1367, %v1379
    %v1382 = vld [vmem:[%s2 + $0x8] sm:$0x1]
    %v1383 = vlaneseq
    %v1384 = vshrl.u32 %v1383, 7
    %v1385 = vsub.s32 0, %v1384
    %v1386 = vrot.slane %v1382, %v1385
    %v1387 = vmul.f32 %v1380, %v1386
    %v1388 = vmul.f32 %v1381, %v1386
    %v1389 = vld [vmem:[%s2 + $0x9] sm:$0x1]
    %v1390 = vlaneseq
    %v1391 = vshrl.u32 %v1390, 7
    %v1392 = vsub.s32 0, %v1391
    %v1393 = vrot.slane %v1389, %v1392
    %v1394 = vadd.f32 %v1387, %v1393
    %v1395 = vadd.f32 %v1388, %v1393
    %v1396 = vpack.c.bf16 %v1395, %v1394
    %v1397 = vld [vmem:[#allocation2 + $0x180] sm:$0xf]
    %v1398 = vld [vmem:[#allocation2 + $0x184] sm:$0xf]
    %v1399 = vld [vmem:[#allocation2 + $0x188] sm:$0xf]
    %v1400 = vld [vmem:[#allocation2 + $0x18c] sm:$0xf]
    %v1401 = vld [vmem:[#allocation2 + $0x190] sm:$0xf]
    %v1402 = vld [vmem:[#allocation2 + $0x194] sm:$0xf]
    %v1403 = vld [vmem:[#allocation2 + $0x198] sm:$0xf]
    %v1404 = vld [vmem:[#allocation2 + $0x19c] sm:$0xf]
    %v1405 = vld [vmem:[#allocation2 + $0x1a0] sm:$0xf]
    %v1406 = vld [vmem:[#allocation2 + $0x1a4] sm:$0xf]
    %v1407 = vld [vmem:[#allocation2 + $0x1a8] sm:$0xf]
    %v1408 = vld [vmem:[#allocation2 + $0x1ac] sm:$0xf]
    %v1409 = vld [vmem:[#allocation2 + $0x1b0] sm:$0xf]
    %v1410 = vld [vmem:[#allocation2 + $0x1b4] sm:$0xf]
    %v1411 = vld [vmem:[#allocation2 + $0x1b8] sm:$0xf]
    %v1412 = vld [vmem:[#allocation2 + $0x1bc] sm:$0xf]
    %v1413 = vld [vmem:[%s2 + $0xa] sm:$0x1]
    %v1414 = vlaneseq
    %v1415 = vshrl.u32 %v1414, 7
    %v1416 = vsub.s32 0, %v1415
    %v1417 = vrot.slane %v1413, %v1416
    %v1434 = vunpack.c.l.b16 %v1397
    %v1435 = vunpack.c.l.b16 %v1398
    %v1436 = vunpack.c.l.b16 %v1399
    %v1437 = vunpack.c.l.b16 %v1400
    %v1438 = vunpack.c.l.b16 %v1401
    %v1439 = vunpack.c.l.b16 %v1402
    %v1440 = vunpack.c.l.b16 %v1403
    %v1441 = vunpack.c.l.b16 %v1404
    %v1442 = vunpack.c.l.b16 %v1405
    %v1443 = vunpack.c.l.b16 %v1406
    %v1444 = vunpack.c.l.b16 %v1407
    %v1445 = vunpack.c.l.b16 %v1408
    %v1446 = vunpack.c.l.b16 %v1409
    %v1447 = vunpack.c.l.b16 %v1410
    %v1448 = vunpack.c.l.b16 %v1411
    %v1449 = vunpack.c.l.b16 %v1412
    %v1450 = vpack.c.b16 %v1435, %v1434
    %v1451 = vpack.c.b16 %v1437, %v1436
    %v1452 = vpack.c.b16 %v1439, %v1438
    %v1453 = vpack.c.b16 %v1441, %v1440
    %v1454 = vpack.c.b16 %v1443, %v1442
    %v1455 = vpack.c.b16 %v1445, %v1444
    %v1456 = vpack.c.b16 %v1447, %v1446
    %v1457 = vpack.c.b16 %v1449, %v1448
    %1466 = vmatprep.subr.bf16.mxu0 0
    %1467 = vmatpush1.bf16.msra.mxu0 %v1450
    %1468 = vmatprep.subr.bf16.mxu0 0
    %1469 = vmatpush1.bf16.msra.mxu0 %v1451
    %1470 = vmatprep.subr.bf16.mxu0 0
    %1471 = vmatpush1.bf16.msra.mxu0 %v1452
    %1472 = vmatprep.subr.bf16.mxu0 0
    %1473 = vmatpush1.bf16.msra.mxu0 %v1453
    %1474 = vmatprep.subr.bf16.mxu0 0
    %1475 = vmatpush1.bf16.msra.mxu0 %v1454
    %1476 = vmatprep.subr.bf16.mxu0 0
    %1477 = vmatpush1.bf16.msra.mxu0 %v1455
    %1478 = vmatprep.subr.bf16.mxu0 0
    %1479 = vmatpush1.bf16.msra.mxu0 %v1456
    %1480 = vmatprep.subr.bf16.mxu0 0
    %1481 = vmatpush1.bf16.msra.mxu0 %v1457
    %1482 = vmatprep.subr.bf16.mxu0 0
    %1483 = vmatpush1.bf16.msra.mxu0 0
    %1484 = vmatprep.subr.bf16.mxu0 0
    %1485 = vmatpush1.bf16.msra.mxu0 0
    %1486 = vmatprep.subr.bf16.mxu0 0
    %1487 = vmatpush1.bf16.msra.mxu0 0
    %1488 = vmatprep.subr.bf16.mxu0 0
    %1489 = vmatpush1.bf16.msra.mxu0 0
    %1490 = vmatprep.subr.bf16.mxu0 0
    %1491 = vmatpush1.bf16.msra.mxu0 0
    %1492 = vmatprep.subr.bf16.mxu0 0
    %1493 = vmatpush1.bf16.msra.mxu0 0
    %1494 = vmatprep.subr.bf16.mxu0 0
    %1495 = vmatpush1.bf16.msra.mxu0 0
    %1496 = vmatprep.subr.bf16.mxu0 0
    %1497 = vmatpush1.bf16.msra.mxu0 0
    %1498 = vmatprep.mubr.bf16.mxu0 0
    %1499 = vmatmul.mubr.bf16.gmra.mrb[0].mxu0 %v1396
    %v1500 = vpop.f32.mrb[0].mxu0
    %v1501 = vadd.f32 %v1417, %v1500
    %v1502 = vpop.f32.mrb[0].mxu0
    %v1503 = vpop.f32.mrb[0].mxu0
    %v1504 = vadd.f32 %v1417, %v1503
    %v1505 = vpop.f32.mrb[0].mxu0
    %1506 = vdwg.mxu0
    %v1507 = vmax.f32 %v1501, 0.0
    %v1508 = vmax.f32 %v1504, 0.0
    %v1509 = vpack.c.bf16 %v1508, %v1507
    %v1510 = vld [vmem:[#allocation2 + $0x1c0] sm:$0xf]
    %v1511 = vld [vmem:[#allocation2 + $0x1c4] sm:$0xf]
    %v1512 = vld [vmem:[#allocation2 + $0x1c8] sm:$0xf]
    %v1513 = vld [vmem:[#allocation2 + $0x1cc] sm:$0xf]
    %v1514 = vld [vmem:[#allocation2 + $0x1d0] sm:$0xf]
    %v1515 = vld [vmem:[#allocation2 + $0x1d4] sm:$0xf]
    %v1516 = vld [vmem:[#allocation2 + $0x1d8] sm:$0xf]
    %v1517 = vld [vmem:[#allocation2 + $0x1dc] sm:$0xf]
    %v1518 = vld [vmem:[#allocation2 + $0x1e0] sm:$0xf]
    %v1519 = vld [vmem:[#allocation2 + $0x1e4] sm:$0xf]
    %v1520 = vld [vmem:[#allocation2 + $0x1e8] sm:$0xf]
    %v1521 = vld [vmem:[#allocation2 + $0x1ec] sm:$0xf]
    %v1522 = vld [vmem:[#allocation2 + $0x1f0] sm:$0xf]
    %v1523 = vld [vmem:[#allocation2 + $0x1f4] sm:$0xf]
    %v1524 = vld [vmem:[#allocation2 + $0x1f8] sm:$0xf]
    %v1525 = vld [vmem:[#allocation2 + $0x1fc] sm:$0xf]
    %v1526 = vld [vmem:[%s2 + $0xb] sm:$0x1]
    %v1527 = vlaneseq
    %v1528 = vshrl.u32 %v1527, 7
    %v1529 = vsub.s32 0, %v1528
    %v1530 = vrot.slane %v1526, %v1529
    %v1547 = vunpack.c.l.b16 %v1510
    %v1548 = vunpack.c.l.b16 %v1511
    %v1549 = vunpack.c.l.b16 %v1512
    %v1550 = vunpack.c.l.b16 %v1513
    %v1551 = vunpack.c.l.b16 %v1514
    %v1552 = vunpack.c.l.b16 %v1515
    %v1553 = vunpack.c.l.b16 %v1516
    %v1554 = vunpack.c.l.b16 %v1517
    %v1555 = vunpack.c.l.b16 %v1518
    %v1556 = vunpack.c.l.b16 %v1519
    %v1557 = vunpack.c.l.b16 %v1520
    %v1558 = vunpack.c.l.b16 %v1521
    %v1559 = vunpack.c.l.b16 %v1522
    %v1560 = vunpack.c.l.b16 %v1523
    %v1561 = vunpack.c.l.b16 %v1524
    %v1562 = vunpack.c.l.b16 %v1525
    %v1563 = vpack.c.b16 %v1548, %v1547
    %v1564 = vpack.c.b16 %v1550, %v1549
    %v1565 = vpack.c.b16 %v1552, %v1551
    %v1566 = vpack.c.b16 %v1554, %v1553
    %v1567 = vpack.c.b16 %v1556, %v1555
    %v1568 = vpack.c.b16 %v1558, %v1557
    %v1569 = vpack.c.b16 %v1560, %v1559
    %v1570 = vpack.c.b16 %v1562, %v1561
    %1579 = vmatprep.subr.bf16.mxu0 0
    %1580 = vmatpush1.bf16.msra.mxu0 %v1563
    %1581 = vmatprep.subr.bf16.mxu0 0
    %1582 = vmatpush1.bf16.msra.mxu0 %v1564
    %1583 = vmatprep.subr.bf16.mxu0 0
    %1584 = vmatpush1.bf16.msra.mxu0 %v1565
    %1585 = vmatprep.subr.bf16.mxu0 0
    %1586 = vmatpush1.bf16.msra.mxu0 %v1566
    %1587 = vmatprep.subr.bf16.mxu0 0
    %1588 = vmatpush1.bf16.msra.mxu0 %v1567
    %1589 = vmatprep.subr.bf16.mxu0 0
    %1590 = vmatpush1.bf16.msra.mxu0 %v1568
    %1591 = vmatprep.subr.bf16.mxu0 0
    %1592 = vmatpush1.bf16.msra.mxu0 %v1569
    %1593 = vmatprep.subr.bf16.mxu0 0
    %1594 = vmatpush1.bf16.msra.mxu0 %v1570
    %1595 = vmatprep.subr.bf16.mxu0 0
    %1596 = vmatpush1.bf16.msra.mxu0 0
    %1597 = vmatprep.subr.bf16.mxu0 0
    %1598 = vmatpush1.bf16.msra.mxu0 0
    %1599 = vmatprep.subr.bf16.mxu0 0
    %1600 = vmatpush1.bf16.msra.mxu0 0
    %1601 = vmatprep.subr.bf16.mxu0 0
    %1602 = vmatpush1.bf16.msra.mxu0 0
    %1603 = vmatprep.subr.bf16.mxu0 0
    %1604 = vmatpush1.bf16.msra.mxu0 0
    %1605 = vmatprep.subr.bf16.mxu0 0
    %1606 = vmatpush1.bf16.msra.mxu0 0
    %1607 = vmatprep.subr.bf16.mxu0 0
    %1608 = vmatpush1.bf16.msra.mxu0 0
    %1609 = vmatprep.subr.bf16.mxu0 0
    %1610 = vmatpush1.bf16.msra.mxu0 0
    %1611 = vmatprep.mubr.bf16.mxu0 0
    %1612 = vmatmul.mubr.bf16.gmra.mrb[0].mxu0 %v1509
    %v1613 = vpop.f32.mrb[0].mxu0
    %v1614 = vadd.f32 %v1530, %v1613
    %v1615 = vpop.f32.mrb[0].mxu0
    %v1616 = vpop.f32.mrb[0].mxu0
    %v1617 = vadd.f32 %v1530, %v1616
    %v1618 = vpop.f32.mrb[0].mxu0
    %1619 = vdwg.mxu0
    %v1620 = vmax.f32 %v1614, 0.0
    %v1621 = vmax.f32 %v1617, 0.0
    %v1622 = vpack.c.bf16 %v1621, %v1620
    %v1623 = vld [vmem:[#allocation2 + $0x200] sm:$0xf]
    %v1624 = vld [vmem:[#allocation2 + $0x204] sm:$0xf]
    %v1625 = vld [vmem:[#allocation2 + $0x208] sm:$0xf]
    %v1626 = vld [vmem:[#allocation2 + $0x20c] sm:$0xf]
    %v1627 = vld [vmem:[#allocation2 + $0x210] sm:$0xf]
    %v1628 = vld [vmem:[#allocation2 + $0x214] sm:$0xf]
    %v1629 = vld [vmem:[#allocation2 + $0x218] sm:$0xf]
    %v1630 = vld [vmem:[#allocation2 + $0x21c] sm:$0xf]
    %v1631 = vld [vmem:[#allocation2 + $0x220] sm:$0xf]
    %v1632 = vld [vmem:[#allocation2 + $0x224] sm:$0xf]
    %v1633 = vld [vmem:[#allocation2 + $0x228] sm:$0xf]
    %v1634 = vld [vmem:[#allocation2 + $0x22c] sm:$0xf]
    %v1635 = vld [vmem:[#allocation2 + $0x230] sm:$0xf]
    %v1636 = vld [vmem:[#allocation2 + $0x234] sm:$0xf]
    %v1637 = vld [vmem:[#allocation2 + $0x238] sm:$0xf]
    %v1638 = vld [vmem:[#allocation2 + $0x23c] sm:$0xf]
    %v1639 = vld [vmem:[%s2 + $0xc] sm:$0x1]
    %v1640 = vlaneseq
    %v1641 = vshrl.u32 %v1640, 7
    %v1642 = vsub.s32 0, %v1641
    %v1643 = vrot.slane %v1639, %v1642
    %v1660 = vunpack.c.l.b16 %v1623
    %v1661 = vunpack.c.l.b16 %v1624
    %v1662 = vunpack.c.l.b16 %v1625
    %v1663 = vunpack.c.l.b16 %v1626
    %v1664 = vunpack.c.l.b16 %v1627
    %v1665 = vunpack.c.l.b16 %v1628
    %v1666 = vunpack.c.l.b16 %v1629
    %v1667 = vunpack.c.l.b16 %v1630
    %v1668 = vunpack.c.l.b16 %v1631
    %v1669 = vunpack.c.l.b16 %v1632
    %v1670 = vunpack.c.l.b16 %v1633
    %v1671 = vunpack.c.l.b16 %v1634
    %v1672 = vunpack.c.l.b16 %v1635
    %v1673 = vunpack.c.l.b16 %v1636
    %v1674 = vunpack.c.l.b16 %v1637
    %v1675 = vunpack.c.l.b16 %v1638
    %v1676 = vpack.c.b16 %v1661, %v1660
    %v1677 = vpack.c.b16 %v1663, %v1662
    %v1678 = vpack.c.b16 %v1665, %v1664
    %v1679 = vpack.c.b16 %v1667, %v1666
    %v1680 = vpack.c.b16 %v1669, %v1668
    %v1681 = vpack.c.b16 %v1671, %v1670
    %v1682 = vpack.c.b16 %v1673, %v1672
    %v1683 = vpack.c.b16 %v1675, %v1674
    %1692 = vmatprep.subr.bf16.mxu0 0
    %1693 = vmatpush1.bf16.msra.mxu0 %v1676
    %1694 = vmatprep.subr.bf16.mxu0 0
    %1695 = vmatpush1.bf16.msra.mxu0 %v1677
    %1696 = vmatprep.subr.bf16.mxu0 0
    %1697 = vmatpush1.bf16.msra.mxu0 %v1678
    %1698 = vmatprep.subr.bf16.mxu0 0
    %1699 = vmatpush1.bf16.msra.mxu0 %v1679
    %1700 = vmatprep.subr.bf16.mxu0 0
    %1701 = vmatpush1.bf16.msra.mxu0 %v1680
    %1702 = vmatprep.subr.bf16.mxu0 0
    %1703 = vmatpush1.bf16.msra.mxu0 %v1681
    %1704 = vmatprep.subr.bf16.mxu0 0
    %1705 = vmatpush1.bf16.msra.mxu0 %v1682
    %1706 = vmatprep.subr.bf16.mxu0 0
    %1707 = vmatpush1.bf16.msra.mxu0 %v1683
    %1708 = vmatprep.subr.bf16.mxu0 0
    %1709 = vmatpush1.bf16.msra.mxu0 0
    %1710 = vmatprep.subr.bf16.mxu0 0
    %1711 = vmatpush1.bf16.msra.mxu0 0
    %1712 = vmatprep.subr.bf16.mxu0 0
    %1713 = vmatpush1.bf16.msra.mxu0 0
    %1714 = vmatprep.subr.bf16.mxu0 0
    %1715 = vmatpush1.bf16.msra.mxu0 0
    %1716 = vmatprep.subr.bf16.mxu0 0
    %1717 = vmatpush1.bf16.msra.mxu0 0
    %1718 = vmatprep.subr.bf16.mxu0 0
    %1719 = vmatpush1.bf16.msra.mxu0 0
    %1720 = vmatprep.subr.bf16.mxu0 0
    %1721 = vmatpush1.bf16.msra.mxu0 0
    %1722 = vmatprep.subr.bf16.mxu0 0
    %1723 = vmatpush1.bf16.msra.mxu0 0
    %1724 = vmatprep.mubr.bf16.mxu0 0
    %1725 = vmatmul.mubr.bf16.gmra.mrb[0].mxu0 %v1622
    %v1726 = vpop.f32.mrb[0].mxu0
    %v1727 = vadd.f32 %v1643, %v1726
    %v1728 = vpop.f32.mrb[0].mxu0
    %v1729 = vpop.f32.mrb[0].mxu0
    %v1730 = vadd.f32 %v1643, %v1729
    %v1731 = vpop.f32.mrb[0].mxu0
    %1732 = vdwg.mxu0
    %v1733 = vpack.c.bf16 %v1730, %v1727
    %v1734 = vld [vmem:[#allocation2 + $0x240] sm:$0xf]
    %v1735 = vld [vmem:[#allocation2 + $0x244] sm:$0xf]
    %v1736 = vld [vmem:[#allocation2 + $0x248] sm:$0xf]
    %v1737 = vld [vmem:[#allocation2 + $0x24c] sm:$0xf]
    %v1738 = vld [vmem:[#allocation2 + $0x250] sm:$0xf]
    %v1739 = vld [vmem:[#allocation2 + $0x254] sm:$0xf]
    %v1740 = vld [vmem:[#allocation2 + $0x258] sm:$0xf]
    %v1741 = vld [vmem:[#allocation2 + $0x25c] sm:$0xf]
    %v1742 = vld [vmem:[#allocation2 + $0x260] sm:$0xf]
    %v1743 = vld [vmem:[#allocation2 + $0x264] sm:$0xf]
    %v1744 = vld [vmem:[#allocation2 + $0x268] sm:$0xf]
    %v1745 = vld [vmem:[#allocation2 + $0x26c] sm:$0xf]
    %v1746 = vld [vmem:[#allocation2 + $0x270] sm:$0xf]
    %v1747 = vld [vmem:[#allocation2 + $0x274] sm:$0xf]
    %v1748 = vld [vmem:[#allocation2 + $0x278] sm:$0xf]
    %v1749 = vld [vmem:[#allocation2 + $0x27c] sm:$0xf]
    %v1750 = vld [vmem:[%s2 + $0xd] sm:$0x1]
    %v1751 = vlaneseq
    %v1752 = vshrl.u32 %v1751, 7
    %v1753 = vsub.s32 0, %v1752
    %v1754 = vrot.slane %v1750, %v1753
    %v1771 = vunpack.c.l.b16 %v1734
    %v1772 = vunpack.c.l.b16 %v1735
    %v1773 = vunpack.c.l.b16 %v1736
    %v1774 = vunpack.c.l.b16 %v1737
    %v1775 = vunpack.c.l.b16 %v1738
    %v1776 = vunpack.c.l.b16 %v1739
    %v1777 = vunpack.c.l.b16 %v1740
    %v1778 = vunpack.c.l.b16 %v1741
    %v1779 = vunpack.c.l.b16 %v1742
    %v1780 = vunpack.c.l.b16 %v1743
    %v1781 = vunpack.c.l.b16 %v1744
    %v1782 = vunpack.c.l.b16 %v1745
    %v1783 = vunpack.c.l.b16 %v1746
    %v1784 = vunpack.c.l.b16 %v1747
    %v1785 = vunpack.c.l.b16 %v1748
    %v1786 = vunpack.c.l.b16 %v1749
    %v1787 = vpack.c.b16 %v1772, %v1771
    %v1788 = vpack.c.b16 %v1774, %v1773
    %v1789 = vpack.c.b16 %v1776, %v1775
    %v1790 = vpack.c.b16 %v1778, %v1777
    %v1791 = vpack.c.b16 %v1780, %v1779
    %v1792 = vpack.c.b16 %v1782, %v1781
    %v1793 = vpack.c.b16 %v1784, %v1783
    %v1794 = vpack.c.b16 %v1786, %v1785
    %1803 = vmatprep.subr.bf16.mxu0 0
    %1804 = vmatpush1.bf16.msra.mxu0 %v1787
    %1805 = vmatprep.subr.bf16.mxu0 0
    %1806 = vmatpush1.bf16.msra.mxu0 %v1788
    %1807 = vmatprep.subr.bf16.mxu0 0
    %1808 = vmatpush1.bf16.msra.mxu0 %v1789
    %1809 = vmatprep.subr.bf16.mxu0 0
    %1810 = vmatpush1.bf16.msra.mxu0 %v1790
    %1811 = vmatprep.subr.bf16.mxu0 0
    %1812 = vmatpush1.bf16.msra.mxu0 %v1791
    %1813 = vmatprep.subr.bf16.mxu0 0
    %1814 = vmatpush1.bf16.msra.mxu0 %v1792
    %1815 = vmatprep.subr.bf16.mxu0 0
    %1816 = vmatpush1.bf16.msra.mxu0 %v1793
    %1817 = vmatprep.subr.bf16.mxu0 0
    %1818 = vmatpush1.bf16.msra.mxu0 %v1794
    %1819 = vmatprep.subr.bf16.mxu0 0
    %1820 = vmatpush1.bf16.msra.mxu0 0
    %1821 = vmatprep.subr.bf16.mxu0 0
    %1822 = vmatpush1.bf16.msra.mxu0 0
    %1823 = vmatprep.subr.bf16.mxu0 0
    %1824 = vmatpush1.bf16.msra.mxu0 0
    %1825 = vmatprep.subr.bf16.mxu0 0
    %1826 = vmatpush1.bf16.msra.mxu0 0
    %1827 = vmatprep.subr.bf16.mxu0 0
    %1828 = vmatpush1.bf16.msra.mxu0 0
    %1829 = vmatprep.subr.bf16.mxu0 0
    %1830 = vmatpush1.bf16.msra.mxu0 0
    %1831 = vmatprep.subr.bf16.mxu0 0
    %1832 = vmatpush1.bf16.msra.mxu0 0
    %1833 = vmatprep.subr.bf16.mxu0 0
    %1834 = vmatpush1.bf16.msra.mxu0 0
    %1835 = vmatprep.mubr.bf16.mxu0 0
    %1836 = vmatmul.mubr.bf16.gmra.mrb[0].mxu0 %v1733
    %v1837 = vpop.f32.mrb[0].mxu0
    %v1838 = vadd.f32 %v1754, %v1837
    %v1839 = vpop.f32.mrb[0].mxu0
    %v1840 = vpop.f32.mrb[0].mxu0
    %v1841 = vadd.f32 %v1754, %v1840
    %v1842 = vpop.f32.mrb[0].mxu0
    %1843 = vdwg.mxu0
    %v1844 = vadd.f32 %v1727, %v1838
    %v1845 = vadd.f32 %v1730, %v1841
    %1846 = vst [vmem:[%s3] sm:$0xff] %v1844
    %1847 = vst [vmem:[%s3 + $0x8] sm:$0xff] %v1845
    // Predicated region
    $region18: #{tfmlp_forward.1} parent=1 // pred_check
      _
    $region19: #{tfmlp_forward.1} parent=1 // pred_check_branch
      %1849 = sbr.rel (0) target = $region21
    $region20: #{tfmlp_forward.1} parent=1 // pred_region
      _
    $region21: #{tfmlp_forward.1} parent=1 // pred_fallthru
      _
    // Predicated region
    $region22: #{tfmlp_forward.1} parent=1 // pred_check
      _
    $region23: #{tfmlp_forward.1} parent=1 // pred_check_branch
      %1851 = sbr.rel (0) target = $region25
    $region24: #{tfmlp_forward.1} parent=1 // pred_region
      _
    $region25: #{tfmlp_forward.1} parent=1 // pred_fallthru
      _
    %1852 = vsyncpa [#allocation3], 1

</llo_original>
